<compile_context>
chip_gen: v7x
topology: tpu7x:2x2x1
jax: 0.10.0
libtpu: 0.0.40
codegen_flags: <defaults>
</compile_context>

<pallas_src>
import functools

import jax
import jax.numpy as jnp
from jax.experimental import pallas as pl
from jax.experimental.pallas import tpu as pltpu

PAD_IDX = 0  # stands in for input_field.vocab.stoi['<pad>']


def _round_up(x, m):
    return ((x + m - 1) // m) * m


def _dot_hi(a, b):
    # Full-f32 precision matmul (keeps kernel vs reference comparison tight).
    return jnp.dot(a, b, precision=jax.lax.Precision.HIGHEST)


# ----------------------------------------------------------------------------
# Pallas kernel: one TIME CHUNK (Tc steps) per grid iteration.  Hidden state is
# carried in a VMEM scratch across the sequential ("arbitrary") time axis.
# ----------------------------------------------------------------------------
def gru_chunk_kernel(g_ref, len_ref, whh_ref, bhn_ref, y_ref, h_ref, h_scratch,
                     *, tc, h_dim):
    t_chunk = pl.program_id(1)

    @pl.when(t_chunk == 0)
    def _():
        h_scratch[...] = jnp.zeros_like(h_scratch)

    whh = whh_ref[...]                                   # (Hp, 3*Hp) resident
    lens = len_ref[...]                                  # (Bb, 1) int32 resident
    # Hoist the bias broadcast out of the time loop (no CSE inside loops).
    bhn_b = jnp.broadcast_to(bhn_ref[...], h_scratch.shape)  # (Bb, Hp)
    t0 = t_chunk * tc

    def step(i, h_prev):
        # Pre-gates already contain emb@Wih + b_ih (+ b_hh for r,z gates).
        g = g_ref[i]                                     # (Bb, 3*Hp)
        # Single fused recurrent matmul: one MXU push per timestep.
        hh = jnp.dot(h_prev, whh, preferred_element_type=jnp.float32)
        r = jax.nn.sigmoid(g[:, :h_dim] + hh[:, :h_dim])
        z = jax.nn.sigmoid(g[:, h_dim:2 * h_dim] + hh[:, h_dim:2 * h_dim])
        n = jnp.tanh(g[:, 2 * h_dim:] + r * (hh[:, 2 * h_dim:] + bhn_b))
        h_new = (1.0 - z) * n + z * h_prev
        # Validity mask built from resident lengths (no per-step mask DMA).
        m = ((t0 + i) < lens).astype(jnp.float32)        # (Bb, 1)
        h_next = m * h_new + (1.0 - m) * h_prev          # freeze h past seq end
        y_ref[i] = (m * h_new).astype(y_ref.dtype)       # padded outputs = 0
        return h_next

    h_final = jax.lax.fori_loop(0, tc, step, h_scratch[...],
                                unroll=min(tc, 8))
    h_scratch[...] = h_final

    # Store the final hidden only once per batch block (last time chunk).
    @pl.when(t_chunk == pl.num_programs(1) - 1)
    def _():
        h_ref[...] = h_final.astype(h_ref.dtype)


def choose_time_chunk(t, b_pad, h_pad, vmem_budget_bytes=8 << 20):
    """Time-chunk length from a VMEM stream budget (fits v7x's 64 MiB too)."""
    # Double-buffered streamed blocks: pre-gates (Tc,B,3H) in + y (Tc,B,H) out, f32.
    bytes_per_t = 2 * (b_pad * 3 * h_pad * 4) + 2 * (b_pad * h_pad * 4)
    tc = max(1, min(t, vmem_budget_bytes // bytes_per_t))
    return int(min(tc, 64))


def gru_pallas(gates_tm, lengths_col, whh_cat, bhh_n, *, tc, b_block=None):
    """gates_tm: (Tp, Bp, 3*Hp) f32 pre-gates; lengths_col: (Bp, 1) int32.
    Returns y_tm (Tp, Bp, Hp) and final hidden h (Bp, Hp)."""
    t_pad, b_pad, three_h = gates_tm.shape
    h_pad = three_h // 3
    if b_block is None:
        b_block = b_pad
    nb = b_pad // b_block
    nt = t_pad // tc

    kernel = functools.partial(gru_chunk_kernel, tc=tc, h_dim=h_pad)

    grid_spec = pltpu.PrefetchScalarGridSpec(
        num_scalar_prefetch=0,
        grid=(nb, nt),
        in_specs=[
            pl.BlockSpec((tc, b_block, three_h), lambda b, t: (t, b, 0)),  # pre-gates
            pl.BlockSpec((b_block, 1), lambda b, t: (b, 0)),               # lengths (resident)
            pl.BlockSpec((h_pad, three_h), lambda b, t: (0, 0)),           # fused W_hh^T (resident)
            pl.BlockSpec((1, h_pad), lambda b, t: (0, 0)),                 # b_hh_n (resident)
        ],
        out_specs=[
            pl.BlockSpec((tc, b_block, h_pad), lambda b, t: (t, b, 0)),    # y chunk (lane-dense)
            pl.BlockSpec((b_block, h_pad), lambda b, t: (b, 0)),           # final hidden
        ],
        scratch_shapes=[pltpu.VMEM((b_block, h_pad), jnp.float32)],
    )

    # Generous-but-bounded scoped VMEM (safe on v5e/v6e 128 MiB and v7x 64 MiB).
    est = (2 * tc * b_block * 4 * h_pad * 4            # double-buffered streams
           + 2 * (h_pad * three_h + h_pad + b_block) * 4
           + b_block * h_pad * 4)
    vmem_limit = int(min(max(2 * est, 16 << 20), 32 << 20))

    y_tm, h = pl.pallas_call(
        kernel,
        out_shape=(
            jax.ShapeDtypeStruct((t_pad, b_pad, h_pad), jnp.float32),
            jax.ShapeDtypeStruct((b_pad, h_pad), jnp.float32),
        ),
        grid_spec=grid_spec,
        compiler_params=pltpu.CompilerParams(
            # batch blocks are independent (v7x megacore); time is a serial carry
            dimension_semantics=("parallel", "arbitrary"),
            vmem_limit_bytes=vmem_limit),
    )(gates_tm, lengths_col, whh_cat, bhh_n)
    return y_tm, h


# ----------------------------------------------------------------------------
# Weight preparation: pad H to a lane multiple, fuse gates, fold biases.
# ----------------------------------------------------------------------------
def prepare_gru_weights(params, h_pad):
    # params: wih (3,E,H), whh (3,H,H), bih (3,H), bhh (3,H); gate order [r,z,n].
    wih, whh, bih, bhh = params["wih"], params["whh"], params["bih"], params["bhh"]
    _, e_dim, h = wih.shape
    dh = h_pad - h
    wih_p = jnp.pad(wih, ((0, 0), (0, 0), (0, dh)))                  # (3, E, Hp)
    whh_p = jnp.pad(whh, ((0, 0), (0, dh), (0, dh)))                 # (3, Hp, Hp)
    bih_p = jnp.pad(bih, ((0, 0), (0, dh)))                          # (3, Hp)
    bhh_p = jnp.pad(bhh, ((0, 0), (0, dh)))

    wih_cat = jnp.transpose(wih_p, (1, 0, 2)).reshape(e_dim, 3 * h_pad)
    whh_cat = jnp.transpose(whh_p, (1, 0, 2)).reshape(h_pad, 3 * h_pad)
    # Fold b_ih (all gates) and b_hh for r,z into the hoisted projection bias;
    # b_hh_n must remain inside r*(...) (torch GRU semantics).
    b_cat = jnp.concatenate([bih_p[0] + bhh_p[0],
                             bih_p[1] + bhh_p[1],
                             bih_p[2]], axis=0)                      # (3*Hp,)
    bhh_n = bhh_p[2].reshape(1, h_pad)                               # (1, Hp)
    # TODO(synk): cast wih_cat/whh_cat/pre-gates to bfloat16 on v6e/v7x for 2x
    # MXU throughput (keep the h carry f32; loosen test tolerances accordingly).
    return wih_cat, whh_cat, b_cat, bhh_n


# ----------------------------------------------------------------------------
# Encoder forward: embedding + hoisted input projection in XLA, recurrence in
# the Pallas kernel.  Fully jittable (no host sync).
# ----------------------------------------------------------------------------
def encoder_forward(x, params, max_len=None, idx_pad=PAD_IDX):
    b, t = x.shape
    h = params["whh"].shape[-1]

    lengths = (t - jnp.sum(x == idx_pad, axis=1)).astype(jnp.int32)  # (B,)

    emb = jnp.take(params["emb"], x, axis=0).astype(jnp.float32)     # (B, T, E)
    # embedding_dropout with p=0.0 is the identity.

    # Hardware-friendly padding: B -> multiple of 8 sublanes, H -> 128 lanes.
    h_pad = _round_up(h, 128)
    b_pad = _round_up(b, 8)
    tc = choose_time_chunk(t, b_pad, h_pad)
    t_pad = _round_up(t, tc)
    # Two batch shards when big enough -> both v7x TensorCores do useful work.
    b_block = b_pad // 2 if (b_pad >= 16 and b_pad % 16 == 0) else b_pad

    wih_cat, whh_cat, b_cat, bhh_n = prepare_gru_weights(params, h_pad)

    emb_tm = jnp.transpose(emb, (1, 0, 2))                           # (T, B, E)
    emb_tm = jnp.pad(emb_tm, ((0, t_pad - t), (0, b_pad - b), (0, 0)))
    lengths_p = jnp.pad(lengths, (0, b_pad - b)).reshape(b_pad, 1)   # pad rows -> len 0

    # Hoisted input projection: one big matmul (M = T*B fills the MXU), all
    # bias adds folded here, removed from the serial recurrence.
    e_dim = emb_tm.shape[-1]
    gates = _dot_hi(emb_tm.reshape(t_pad * b_pad, e_dim), wih_cat) + b_cat
    gates = gates.reshape(t_pad, b_pad, 3 * h_pad).astype(jnp.float32)

    y_tm, h_last = gru_pallas(gates, lengths_p, whh_cat, bhh_n,
                              tc=tc, b_block=b_block)

    y = jnp.transpose(y_tm[:t, :b, :h], (1, 0, 2))                   # (B, T, H)
    h_last = h_last[:b, :h][None]                                    # (1, B, H)
    # pad_packed_sequence trims to the longest sequence; pass a *static*
    # max_len to reproduce that trim without a device->host sync.
    if max_len is not None:
        y = y[:, :max_len]
    return y, h_last


# ----------------------------------------------------------------------------
# Pure-JAX reference (lax.scan) for a correctness check.
# ----------------------------------------------------------------------------
def reference_forward(x, params, idx_pad=PAD_IDX):
    b, t = x.shape
    h_dim = params["whh"].shape[-1]
    lengths = (t - jnp.sum(x == idx_pad, axis=1)).astype(jnp.int32)
    emb_tm = jnp.transpose(jnp.take(params["emb"], x, axis=0),
                           (1, 0, 2)).astype(jnp.float32)            # (T, B, E)
    mask_tm = (jnp.arange(t)[:, None] < lengths[None, :]
               ).astype(jnp.float32)[:, :, None]                     # (T, B, 1)
    wih, whh, bih, bhh = (params["wih"], params["whh"],
                          params["bih"], params["bhh"])

    def step(h, inp):
        x_t, m = inp
        r = jax.nn.sigmoid(_dot_hi(x_t, wih[0]) + bih[0] + _dot_hi(h, whh[0]) + bhh[0])
        z = jax.nn.sigmoid(_dot_hi(x_t, wih[1]) + bih[1] + _dot_hi(h, whh[1]) + bhh[1])
        n = jnp.tanh(_dot_hi(x_t, wih[2]) + bih[2] + r * (_dot_hi(h, whh[2]) + bhh[2]))
        h_new = (1.0 - z) * n + z * h
        h_next = m * h_new + (1.0 - m) * h
        return h_next, m * h_new

    h0 = jnp.zeros((b, h_dim), jnp.float32)
    h_last, y_tm = jax.lax.scan(step, h0, (emb_tm, mask_tm))
    return jnp.transpose(y_tm, (1, 0, 2)), h_last[None]


# ----------------------------------------------------------------------------
# Deterministic parameter construction (shapes follow Encoder.__init__).
# ----------------------------------------------------------------------------
def make_params(key, n_vocab, n_emb, n_h):
    k_emb, k_wih, k_whh, k_bih, k_bhh = jax.random.split(key, 5)
    bound = 1.0 / jnp.sqrt(n_h)
    emb = jax.random.normal(k_emb, (n_vocab, n_emb), jnp.float32)
    # torch.nn.GRU: weight_ih_l0 (3H,E), weight_hh_l0 (3H,H), gates [r,z,n].
    # Stored pre-transposed per gate: wih (3,E,H), whh (3,H,H).
    wih = jax.random.uniform(k_wih, (3, n_emb, n_h), jnp.float32, -bound, bound)
    whh = jax.random.uniform(k_whh, (3, n_h, n_h), jnp.float32, -bound, bound)
    bih = jax.random.uniform(k_bih, (3, n_h), jnp.float32, -bound, bound)
    bhh = jax.random.uniform(k_bhh, (3, n_h), jnp.float32, -bound, bound)
    return {"emb": emb, "wih": wih, "whh": whh, "bih": bih, "bhh": bhh}


if __name__ == "__main__":
    n_vocab, n_emb, n_h = 16, 32, 32
    B, T = 2, 8

    key = jax.random.PRNGKey(0)
    k_params, k_tok = jax.random.split(key, 2)
    params = make_params(k_params, n_vocab, n_emb, n_h)

    # Token ids with trailing <pad> tokens (pack_padded_sequence layout).
    tokens = jax.random.randint(k_tok, (B, T), 1, n_vocab, dtype=jnp.int32)
    lengths = jnp.array([T, T - 3], dtype=jnp.int32)   # seq 0 full, seq 1 padded
    pad_mask = jnp.arange(T)[None, :] >= lengths[:, None]
    x = jnp.where(pad_mask, PAD_IDX, tokens)

    fwd = jax.jit(encoder_forward)       # no host sync -> fully jittable
    y, h = fwd(x, params)
    jax.block_until_ready((y, h))

    y_ref, h_ref = reference_forward(x, params)
    assert y.shape == y_ref.shape and h.shape == h_ref.shape
    assert jnp.allclose(y, y_ref, rtol=1e-3, atol=1e-5), \
        float(jnp.max(jnp.abs(y - y_ref)))
    assert jnp.allclose(h, h_ref, rtol=1e-3, atol=1e-5), \
        float(jnp.max(jnp.abs(h - h_ref)))

    print("KERNEL_OK")
</pallas_src>

<mosaic_0001>
module attributes {stable_mosaic.version = 11 : i64} {
  func.func @gru_chunk_kernel(%arg0: i32, %arg1: i32, %arg2: memref<8x8x384xf32, #tpu.memory_space<vmem>>, %arg3: memref<8x1xi32, #tpu.memory_space<vmem>>, %arg4: memref<128x384xf32, #tpu.memory_space<vmem>>, %arg5: memref<1x128xf32, #tpu.memory_space<vmem>>, %arg6: memref<8x8x128xf32, #tpu.memory_space<vmem>>, %arg7: memref<8x128xf32, #tpu.memory_space<vmem>>, %arg8: memref<8x128xf32, #tpu.memory_space<vmem>>) attributes {dimension_semantics = [#tpu.dimension_semantics<parallel>, #tpu.dimension_semantics<arbitrary>], iteration_bounds = array<i64: 1, 1>, scalar_prefetch = 0 : i64, scratch_operands = 1 : i64, tpu.core_type = #tpu.core_type<tc>, window_params = [{transform_indices = @transform_0, window_bounds = array<i64: 8, 8, 384>}, {transform_indices = @transform_1, window_bounds = array<i64: 8, 1>}, {pipeline_mode = #tpu.pipeline_mode<synchronous>, transform_indices = @transform_2, window_bounds = array<i64: 128, 384>}, {pipeline_mode = #tpu.pipeline_mode<synchronous>, transform_indices = @transform_3, window_bounds = array<i64: 1, 128>}, {transform_indices = @transform_4, window_bounds = array<i64: 8, 8, 128>}, {transform_indices = @transform_5, window_bounds = array<i64: 8, 128>}]} {
    %c0_i32 = arith.constant 0 : i32
    %0 = arith.cmpi eq, %arg1, %c0_i32 : i32
    %1 = arith.extui %0 : i1 to i32
    %c0_i32_0 = arith.constant 0 : i32
    %2 = arith.cmpi ne, %1, %c0_i32_0 : i32
    scf.if %2 {
      %cst_85 = arith.constant 0.000000e+00 : f32
      %406 = vector.broadcast %cst_85 : f32 to vector<8x128xf32>
      %c0_86 = arith.constant 0 : index
      %c0_87 = arith.constant 0 : index
      %407 = vector.load %arg8[%c0_86, %c0_87] : memref<8x128xf32, #tpu.memory_space<vmem>>, vector<8x128xf32>
      tpu.vector_store %arg8[%c0_86, %c0_87], %406 {strides = array<i32>} : memref<8x128xf32, #tpu.memory_space<vmem>>, vector<8x128xf32>,
    } else {
    }
    %c0 = arith.constant 0 : index
    %c0_1 = arith.constant 0 : index
    %3 = vector.load %arg4[%c0, %c0_1] : memref<128x384xf32, #tpu.memory_space<vmem>>, vector<128x384xf32>
    %c0_2 = arith.constant 0 : index
    %c0_3 = arith.constant 0 : index
    %4 = vector.load %arg3[%c0_2, %c0_3] : memref<8x1xi32, #tpu.memory_space<vmem>>, vector<8x1xi32>
    %c0_4 = arith.constant 0 : index
    %c0_5 = arith.constant 0 : index
    %5 = vector.load %arg5[%c0_4, %c0_5] : memref<1x128xf32, #tpu.memory_space<vmem>>, vector<1x128xf32>
    %6 = vector.shape_cast %5 : vector<1x128xf32> to vector<1x128xf32>
    %7 = vector.broadcast %6 : vector<1x128xf32> to vector<8x128xf32>
    %c8_i32 = arith.constant 8 : i32
    %8 = arith.muli %arg1, %c8_i32 : i32
    %c0_6 = arith.constant 0 : index
    %c0_7 = arith.constant 0 : index
    %9 = vector.load %arg8[%c0_6, %c0_7] : memref<8x128xf32, #tpu.memory_space<vmem>>, vector<8x128xf32>
    %c0_i32_8 = arith.constant 0 : i32
    %10 = arith.index_cast %c0_i32_8 : i32 to index
    %c0_9 = arith.constant 0 : index
    %c0_10 = arith.constant 0 : index
    %11 = vector.load %arg2[%10, %c0_9, %c0_10] : memref<8x8x384xf32, #tpu.memory_space<vmem>>, vector<1x8x384xf32>
    %12 = vector.shape_cast %11 : vector<1x8x384xf32> to vector<8x384xf32>
    %cst = arith.constant dense<0.000000e+00> : vector<8x384xf32>
    %13 = tpu.matmul %9, %3, %cst {dimension_numbers = #tpu.dot_dimension_numbers<[1], [0], [0], [1], [0, 0, 1, 1], [], []>} : vector<8x128xf32>, vector<128x384xf32>, vector<8x384xf32> -> vector<8x384xf32>
    %14 = vector.extract_strided_slice %12 {offsets = [0, 0], sizes = [8, 128], strides = [1, 1]} : vector<8x384xf32> to vector<8x128xf32>
    %15 = vector.extract_strided_slice %13 {offsets = [0, 0], sizes = [8, 128], strides = [1, 1]} : vector<8x384xf32> to vector<8x128xf32>
    %16 = arith.addf %14, %15 : vector<8x128xf32>
    %17 = arith.negf %16 : vector<8x128xf32>
    %18 = math.exp %17 : vector<8x128xf32>
    %cst_11 = arith.constant 1.000000e+00 : f32
    %19 = vector.broadcast %cst_11 : f32 to vector<8x128xf32>
    %20 = arith.addf %19, %18 : vector<8x128xf32>
    %21 = arith.divf %19, %20 : vector<8x128xf32>
    %22 = vector.extract_strided_slice %12 {offsets = [0, 128], sizes = [8, 128], strides = [1, 1]} : vector<8x384xf32> to vector<8x128xf32>
    %23 = vector.extract_strided_slice %13 {offsets = [0, 128], sizes = [8, 128], strides = [1, 1]} : vector<8x384xf32> to vector<8x128xf32>
    %24 = arith.addf %22, %23 : vector<8x128xf32>
    %25 = arith.negf %24 : vector<8x128xf32>
    %26 = math.exp %25 : vector<8x128xf32>
    %cst_12 = arith.constant 1.000000e+00 : f32
    %27 = vector.broadcast %cst_12 : f32 to vector<8x128xf32>
    %28 = arith.addf %27, %26 : vector<8x128xf32>
    %29 = arith.divf %27, %28 : vector<8x128xf32>
    %30 = vector.extract_strided_slice %12 {offsets = [0, 256], sizes = [8, 128], strides = [1, 1]} : vector<8x384xf32> to vector<8x128xf32>
    %31 = vector.extract_strided_slice %13 {offsets = [0, 256], sizes = [8, 128], strides = [1, 1]} : vector<8x384xf32> to vector<8x128xf32>
    %32 = arith.addf %31, %7 : vector<8x128xf32>
    %33 = arith.mulf %21, %32 : vector<8x128xf32>
    %34 = arith.addf %30, %33 : vector<8x128xf32>
    %35 = math.tanh %34 : vector<8x128xf32>
    %cst_13 = arith.constant 1.000000e+00 : f32
    %36 = vector.broadcast %cst_13 : f32 to vector<8x128xf32>
    %37 = arith.subf %36, %29 : vector<8x128xf32>
    %38 = arith.mulf %37, %35 : vector<8x128xf32>
    %39 = arith.mulf %29, %9 : vector<8x128xf32>
    %40 = arith.addf %38, %39 : vector<8x128xf32>
    %41 = arith.addi %8, %c0_i32_8 : i32
    %42 = vector.broadcast %41 : i32 to vector<8x1xi32>
    %43 = arith.cmpi slt, %42, %4 : vector<8x1xi32>
    %44 = arith.extui %43 : vector<8x1xi1> to vector<8x1xi32>
    %45 = arith.sitofp %44 : vector<8x1xi32> to vector<8x1xf32>
    %46 = vector.broadcast %45 : vector<8x1xf32> to vector<8x128xf32>
    %47 = arith.mulf %46, %40 : vector<8x128xf32>
    %cst_14 = arith.constant 1.000000e+00 : f32
    %48 = vector.broadcast %cst_14 : f32 to vector<8x1xf32>
    %49 = arith.subf %48, %45 : vector<8x1xf32>
    %50 = vector.broadcast %49 : vector<8x1xf32> to vector<8x128xf32>
    %51 = arith.mulf %50, %9 : vector<8x128xf32>
    %52 = arith.addf %47, %51 : vector<8x128xf32>
    %53 = vector.broadcast %45 : vector<8x1xf32> to vector<8x128xf32>
    %54 = arith.mulf %53, %40 : vector<8x128xf32>
    %55 = arith.index_cast %c0_i32_8 : i32 to index
    %c0_15 = arith.constant 0 : index
    %c0_16 = arith.constant 0 : index
    %56 = vector.load %arg6[%55, %c0_15, %c0_16] : memref<8x8x128xf32, #tpu.memory_space<vmem>>, vector<1x8x128xf32>
    %57 = vector.shape_cast %56 : vector<1x8x128xf32> to vector<8x128xf32>
    %58 = vector.shape_cast %54 : vector<8x128xf32> to vector<1x8x128xf32>
    tpu.vector_store %arg6[%55, %c0_15, %c0_16], %58 {strides = array<i32>} : memref<8x8x128xf32, #tpu.memory_space<vmem>>, vector<1x8x128xf32>,
    %c1_i32 = arith.constant 1 : i32
    %59 = arith.index_cast %c1_i32 : i32 to index
    %c0_17 = arith.constant 0 : index
    %c0_18 = arith.constant 0 : index
    %60 = vector.load %arg2[%59, %c0_17, %c0_18] : memref<8x8x384xf32, #tpu.memory_space<vmem>>, vector<1x8x384xf32>
    %61 = vector.shape_cast %60 : vector<1x8x384xf32> to vector<8x384xf32>
    %cst_19 = arith.constant dense<0.000000e+00> : vector<8x384xf32>
    %62 = tpu.matmul %52, %3, %cst_19 {dimension_numbers = #tpu.dot_dimension_numbers<[1], [0], [0], [1], [0, 0, 1, 1], [], []>} : vector<8x128xf32>, vector<128x384xf32>, vector<8x384xf32> -> vector<8x384xf32>
    %63 = vector.extract_strided_slice %61 {offsets = [0, 0], sizes = [8, 128], strides = [1, 1]} : vector<8x384xf32> to vector<8x128xf32>
    %64 = vector.extract_strided_slice %62 {offsets = [0, 0], sizes = [8, 128], strides = [1, 1]} : vector<8x384xf32> to vector<8x128xf32>
    %65 = arith.addf %63, %64 : vector<8x128xf32>
    %66 = arith.negf %65 : vector<8x128xf32>
    %67 = math.exp %66 : vector<8x128xf32>
    %cst_20 = arith.constant 1.000000e+00 : f32
    %68 = vector.broadcast %cst_20 : f32 to vector<8x128xf32>
    %69 = arith.addf %68, %67 : vector<8x128xf32>
    %70 = arith.divf %68, %69 : vector<8x128xf32>
    %71 = vector.extract_strided_slice %61 {offsets = [0, 128], sizes = [8, 128], strides = [1, 1]} : vector<8x384xf32> to vector<8x128xf32>
    %72 = vector.extract_strided_slice %62 {offsets = [0, 128], sizes = [8, 128], strides = [1, 1]} : vector<8x384xf32> to vector<8x128xf32>
    %73 = arith.addf %71, %72 : vector<8x128xf32>
    %74 = arith.negf %73 : vector<8x128xf32>
    %75 = math.exp %74 : vector<8x128xf32>
    %cst_21 = arith.constant 1.000000e+00 : f32
    %76 = vector.broadcast %cst_21 : f32 to vector<8x128xf32>
    %77 = arith.addf %76, %75 : vector<8x128xf32>
    %78 = arith.divf %76, %77 : vector<8x128xf32>
    %79 = vector.extract_strided_slice %61 {offsets = [0, 256], sizes = [8, 128], strides = [1, 1]} : vector<8x384xf32> to vector<8x128xf32>
    %80 = vector.extract_strided_slice %62 {offsets = [0, 256], sizes = [8, 128], strides = [1, 1]} : vector<8x384xf32> to vector<8x128xf32>
    %81 = arith.addf %80, %7 : vector<8x128xf32>
    %82 = arith.mulf %70, %81 : vector<8x128xf32>
    %83 = arith.addf %79, %82 : vector<8x128xf32>
    %84 = math.tanh %83 : vector<8x128xf32>
    %cst_22 = arith.constant 1.000000e+00 : f32
    %85 = vector.broadcast %cst_22 : f32 to vector<8x128xf32>
    %86 = arith.subf %85, %78 : vector<8x128xf32>
    %87 = arith.mulf %86, %84 : vector<8x128xf32>
    %88 = arith.mulf %78, %52 : vector<8x128xf32>
    %89 = arith.addf %87, %88 : vector<8x128xf32>
    %90 = arith.addi %8, %c1_i32 : i32
    %91 = vector.broadcast %90 : i32 to vector<8x1xi32>
    %92 = arith.cmpi slt, %91, %4 : vector<8x1xi32>
    %93 = arith.extui %92 : vector<8x1xi1> to vector<8x1xi32>
    %94 = arith.sitofp %93 : vector<8x1xi32> to vector<8x1xf32>
    %95 = vector.broadcast %94 : vector<8x1xf32> to vector<8x128xf32>
    %96 = arith.mulf %95, %89 : vector<8x128xf32>
    %cst_23 = arith.constant 1.000000e+00 : f32
    %97 = vector.broadcast %cst_23 : f32 to vector<8x1xf32>
    %98 = arith.subf %97, %94 : vector<8x1xf32>
    %99 = vector.broadcast %98 : vector<8x1xf32> to vector<8x128xf32>
    %100 = arith.mulf %99, %52 : vector<8x128xf32>
    %101 = arith.addf %96, %100 : vector<8x128xf32>
    %102 = vector.broadcast %94 : vector<8x1xf32> to vector<8x128xf32>
    %103 = arith.mulf %102, %89 : vector<8x128xf32>
    %104 = arith.index_cast %c1_i32 : i32 to index
    %c0_24 = arith.constant 0 : index
    %c0_25 = arith.constant 0 : index
    %105 = vector.load %arg6[%104, %c0_24, %c0_25] : memref<8x8x128xf32, #tpu.memory_space<vmem>>, vector<1x8x128xf32>
    %106 = vector.shape_cast %105 : vector<1x8x128xf32> to vector<8x128xf32>
    %107 = vector.shape_cast %103 : vector<8x128xf32> to vector<1x8x128xf32>
    tpu.vector_store %arg6[%104, %c0_24, %c0_25], %107 {strides = array<i32>} : memref<8x8x128xf32, #tpu.memory_space<vmem>>, vector<1x8x128xf32>,
    %c2_i32 = arith.constant 2 : i32
    %108 = arith.index_cast %c2_i32 : i32 to index
    %c0_26 = arith.constant 0 : index
    %c0_27 = arith.constant 0 : index
    %109 = vector.load %arg2[%108, %c0_26, %c0_27] : memref<8x8x384xf32, #tpu.memory_space<vmem>>, vector<1x8x384xf32>
    %110 = vector.shape_cast %109 : vector<1x8x384xf32> to vector<8x384xf32>
    %cst_28 = arith.constant dense<0.000000e+00> : vector<8x384xf32>
    %111 = tpu.matmul %101, %3, %cst_28 {dimension_numbers = #tpu.dot_dimension_numbers<[1], [0], [0], [1], [0, 0, 1, 1], [], []>} : vector<8x128xf32>, vector<128x384xf32>, vector<8x384xf32> -> vector<8x384xf32>
    %112 = vector.extract_strided_slice %110 {offsets = [0, 0], sizes = [8, 128], strides = [1, 1]} : vector<8x384xf32> to vector<8x128xf32>
    %113 = vector.extract_strided_slice %111 {offsets = [0, 0], sizes = [8, 128], strides = [1, 1]} : vector<8x384xf32> to vector<8x128xf32>
    %114 = arith.addf %112, %113 : vector<8x128xf32>
    %115 = arith.negf %114 : vector<8x128xf32>
    %116 = math.exp %115 : vector<8x128xf32>
    %cst_29 = arith.constant 1.000000e+00 : f32
    %117 = vector.broadcast %cst_29 : f32 to vector<8x128xf32>
    %118 = arith.addf %117, %116 : vector<8x128xf32>
    %119 = arith.divf %117, %118 : vector<8x128xf32>
    %120 = vector.extract_strided_slice %110 {offsets = [0, 128], sizes = [8, 128], strides = [1, 1]} : vector<8x384xf32> to vector<8x128xf32>
    %121 = vector.extract_strided_slice %111 {offsets = [0, 128], sizes = [8, 128], strides = [1, 1]} : vector<8x384xf32> to vector<8x128xf32>
    %122 = arith.addf %120, %121 : vector<8x128xf32>
    %123 = arith.negf %122 : vector<8x128xf32>
    %124 = math.exp %123 : vector<8x128xf32>
    %cst_30 = arith.constant 1.000000e+00 : f32
    %125 = vector.broadcast %cst_30 : f32 to vector<8x128xf32>
    %126 = arith.addf %125, %124 : vector<8x128xf32>
    %127 = arith.divf %125, %126 : vector<8x128xf32>
    %128 = vector.extract_strided_slice %110 {offsets = [0, 256], sizes = [8, 128], strides = [1, 1]} : vector<8x384xf32> to vector<8x128xf32>
    %129 = vector.extract_strided_slice %111 {offsets = [0, 256], sizes = [8, 128], strides = [1, 1]} : vector<8x384xf32> to vector<8x128xf32>
    %130 = arith.addf %129, %7 : vector<8x128xf32>
    %131 = arith.mulf %119, %130 : vector<8x128xf32>
    %132 = arith.addf %128, %131 : vector<8x128xf32>
    %133 = math.tanh %132 : vector<8x128xf32>
    %cst_31 = arith.constant 1.000000e+00 : f32
    %134 = vector.broadcast %cst_31 : f32 to vector<8x128xf32>
    %135 = arith.subf %134, %127 : vector<8x128xf32>
    %136 = arith.mulf %135, %133 : vector<8x128xf32>
    %137 = arith.mulf %127, %101 : vector<8x128xf32>
    %138 = arith.addf %136, %137 : vector<8x128xf32>
    %139 = arith.addi %8, %c2_i32 : i32
    %140 = vector.broadcast %139 : i32 to vector<8x1xi32>
    %141 = arith.cmpi slt, %140, %4 : vector<8x1xi32>
    %142 = arith.extui %141 : vector<8x1xi1> to vector<8x1xi32>
    %143 = arith.sitofp %142 : vector<8x1xi32> to vector<8x1xf32>
    %144 = vector.broadcast %143 : vector<8x1xf32> to vector<8x128xf32>
    %145 = arith.mulf %144, %138 : vector<8x128xf32>
    %cst_32 = arith.constant 1.000000e+00 : f32
    %146 = vector.broadcast %cst_32 : f32 to vector<8x1xf32>
    %147 = arith.subf %146, %143 : vector<8x1xf32>
    %148 = vector.broadcast %147 : vector<8x1xf32> to vector<8x128xf32>
    %149 = arith.mulf %148, %101 : vector<8x128xf32>
    %150 = arith.addf %145, %149 : vector<8x128xf32>
    %151 = vector.broadcast %143 : vector<8x1xf32> to vector<8x128xf32>
    %152 = arith.mulf %151, %138 : vector<8x128xf32>
    %153 = arith.index_cast %c2_i32 : i32 to index
    %c0_33 = arith.constant 0 : index
    %c0_34 = arith.constant 0 : index
    %154 = vector.load %arg6[%153, %c0_33, %c0_34] : memref<8x8x128xf32, #tpu.memory_space<vmem>>, vector<1x8x128xf32>
    %155 = vector.shape_cast %154 : vector<1x8x128xf32> to vector<8x128xf32>
    %156 = vector.shape_cast %152 : vector<8x128xf32> to vector<1x8x128xf32>
    tpu.vector_store %arg6[%153, %c0_33, %c0_34], %156 {strides = array<i32>} : memref<8x8x128xf32, #tpu.memory_space<vmem>>, vector<1x8x128xf32>,
    %c3_i32 = arith.constant 3 : i32
    %157 = arith.index_cast %c3_i32 : i32 to index
    %c0_35 = arith.constant 0 : index
    %c0_36 = arith.constant 0 : index
    %158 = vector.load %arg2[%157, %c0_35, %c0_36] : memref<8x8x384xf32, #tpu.memory_space<vmem>>, vector<1x8x384xf32>
    %159 = vector.shape_cast %158 : vector<1x8x384xf32> to vector<8x384xf32>
    %cst_37 = arith.constant dense<0.000000e+00> : vector<8x384xf32>
    %160 = tpu.matmul %150, %3, %cst_37 {dimension_numbers = #tpu.dot_dimension_numbers<[1], [0], [0], [1], [0, 0, 1, 1], [], []>} : vector<8x128xf32>, vector<128x384xf32>, vector<8x384xf32> -> vector<8x384xf32>
    %161 = vector.extract_strided_slice %159 {offsets = [0, 0], sizes = [8, 128], strides = [1, 1]} : vector<8x384xf32> to vector<8x128xf32>
    %162 = vector.extract_strided_slice %160 {offsets = [0, 0], sizes = [8, 128], strides = [1, 1]} : vector<8x384xf32> to vector<8x128xf32>
    %163 = arith.addf %161, %162 : vector<8x128xf32>
    %164 = arith.negf %163 : vector<8x128xf32>
    %165 = math.exp %164 : vector<8x128xf32>
    %cst_38 = arith.constant 1.000000e+00 : f32
    %166 = vector.broadcast %cst_38 : f32 to vector<8x128xf32>
    %167 = arith.addf %166, %165 : vector<8x128xf32>
    %168 = arith.divf %166, %167 : vector<8x128xf32>
    %169 = vector.extract_strided_slice %159 {offsets = [0, 128], sizes = [8, 128], strides = [1, 1]} : vector<8x384xf32> to vector<8x128xf32>
    %170 = vector.extract_strided_slice %160 {offsets = [0, 128], sizes = [8, 128], strides = [1, 1]} : vector<8x384xf32> to vector<8x128xf32>
    %171 = arith.addf %169, %170 : vector<8x128xf32>
    %172 = arith.negf %171 : vector<8x128xf32>
    %173 = math.exp %172 : vector<8x128xf32>
    %cst_39 = arith.constant 1.000000e+00 : f32
    %174 = vector.broadcast %cst_39 : f32 to vector<8x128xf32>
    %175 = arith.addf %174, %173 : vector<8x128xf32>
    %176 = arith.divf %174, %175 : vector<8x128xf32>
    %177 = vector.extract_strided_slice %159 {offsets = [0, 256], sizes = [8, 128], strides = [1, 1]} : vector<8x384xf32> to vector<8x128xf32>
    %178 = vector.extract_strided_slice %160 {offsets = [0, 256], sizes = [8, 128], strides = [1, 1]} : vector<8x384xf32> to vector<8x128xf32>
    %179 = arith.addf %178, %7 : vector<8x128xf32>
    %180 = arith.mulf %168, %179 : vector<8x128xf32>
    %181 = arith.addf %177, %180 : vector<8x128xf32>
    %182 = math.tanh %181 : vector<8x128xf32>
    %cst_40 = arith.constant 1.000000e+00 : f32
    %183 = vector.broadcast %cst_40 : f32 to vector<8x128xf32>
    %184 = arith.subf %183, %176 : vector<8x128xf32>
    %185 = arith.mulf %184, %182 : vector<8x128xf32>
    %186 = arith.mulf %176, %150 : vector<8x128xf32>
    %187 = arith.addf %185, %186 : vector<8x128xf32>
    %188 = arith.addi %8, %c3_i32 : i32
    %189 = vector.broadcast %188 : i32 to vector<8x1xi32>
    %190 = arith.cmpi slt, %189, %4 : vector<8x1xi32>
    %191 = arith.extui %190 : vector<8x1xi1> to vector<8x1xi32>
    %192 = arith.sitofp %191 : vector<8x1xi32> to vector<8x1xf32>
    %193 = vector.broadcast %192 : vector<8x1xf32> to vector<8x128xf32>
    %194 = arith.mulf %193, %187 : vector<8x128xf32>
    %cst_41 = arith.constant 1.000000e+00 : f32
    %195 = vector.broadcast %cst_41 : f32 to vector<8x1xf32>
    %196 = arith.subf %195, %192 : vector<8x1xf32>
    %197 = vector.broadcast %196 : vector<8x1xf32> to vector<8x128xf32>
    %198 = arith.mulf %197, %150 : vector<8x128xf32>
    %199 = arith.addf %194, %198 : vector<8x128xf32>
    %200 = vector.broadcast %192 : vector<8x1xf32> to vector<8x128xf32>
    %201 = arith.mulf %200, %187 : vector<8x128xf32>
    %202 = arith.index_cast %c3_i32 : i32 to index
    %c0_42 = arith.constant 0 : index
    %c0_43 = arith.constant 0 : index
    %203 = vector.load %arg6[%202, %c0_42, %c0_43] : memref<8x8x128xf32, #tpu.memory_space<vmem>>, vector<1x8x128xf32>
    %204 = vector.shape_cast %203 : vector<1x8x128xf32> to vector<8x128xf32>
    %205 = vector.shape_cast %201 : vector<8x128xf32> to vector<1x8x128xf32>
    tpu.vector_store %arg6[%202, %c0_42, %c0_43], %205 {strides = array<i32>} : memref<8x8x128xf32, #tpu.memory_space<vmem>>, vector<1x8x128xf32>,
    %c4_i32 = arith.constant 4 : i32
    %206 = arith.index_cast %c4_i32 : i32 to index
    %c0_44 = arith.constant 0 : index
    %c0_45 = arith.constant 0 : index
    %207 = vector.load %arg2[%206, %c0_44, %c0_45] : memref<8x8x384xf32, #tpu.memory_space<vmem>>, vector<1x8x384xf32>
    %208 = vector.shape_cast %207 : vector<1x8x384xf32> to vector<8x384xf32>
    %cst_46 = arith.constant dense<0.000000e+00> : vector<8x384xf32>
    %209 = tpu.matmul %199, %3, %cst_46 {dimension_numbers = #tpu.dot_dimension_numbers<[1], [0], [0], [1], [0, 0, 1, 1], [], []>} : vector<8x128xf32>, vector<128x384xf32>, vector<8x384xf32> -> vector<8x384xf32>
    %210 = vector.extract_strided_slice %208 {offsets = [0, 0], sizes = [8, 128], strides = [1, 1]} : vector<8x384xf32> to vector<8x128xf32>
    %211 = vector.extract_strided_slice %209 {offsets = [0, 0], sizes = [8, 128], strides = [1, 1]} : vector<8x384xf32> to vector<8x128xf32>
    %212 = arith.addf %210, %211 : vector<8x128xf32>
    %213 = arith.negf %212 : vector<8x128xf32>
    %214 = math.exp %213 : vector<8x128xf32>
    %cst_47 = arith.constant 1.000000e+00 : f32
    %215 = vector.broadcast %cst_47 : f32 to vector<8x128xf32>
    %216 = arith.addf %215, %214 : vector<8x128xf32>
    %217 = arith.divf %215, %216 : vector<8x128xf32>
    %218 = vector.extract_strided_slice %208 {offsets = [0, 128], sizes = [8, 128], strides = [1, 1]} : vector<8x384xf32> to vector<8x128xf32>
    %219 = vector.extract_strided_slice %209 {offsets = [0, 128], sizes = [8, 128], strides = [1, 1]} : vector<8x384xf32> to vector<8x128xf32>
    %220 = arith.addf %218, %219 : vector<8x128xf32>
    %221 = arith.negf %220 : vector<8x128xf32>
    %222 = math.exp %221 : vector<8x128xf32>
    %cst_48 = arith.constant 1.000000e+00 : f32
    %223 = vector.broadcast %cst_48 : f32 to vector<8x128xf32>
    %224 = arith.addf %223, %222 : vector<8x128xf32>
    %225 = arith.divf %223, %224 : vector<8x128xf32>
    %226 = vector.extract_strided_slice %208 {offsets = [0, 256], sizes = [8, 128], strides = [1, 1]} : vector<8x384xf32> to vector<8x128xf32>
    %227 = vector.extract_strided_slice %209 {offsets = [0, 256], sizes = [8, 128], strides = [1, 1]} : vector<8x384xf32> to vector<8x128xf32>
    %228 = arith.addf %227, %7 : vector<8x128xf32>
    %229 = arith.mulf %217, %228 : vector<8x128xf32>
    %230 = arith.addf %226, %229 : vector<8x128xf32>
    %231 = math.tanh %230 : vector<8x128xf32>
    %cst_49 = arith.constant 1.000000e+00 : f32
    %232 = vector.broadcast %cst_49 : f32 to vector<8x128xf32>
    %233 = arith.subf %232, %225 : vector<8x128xf32>
    %234 = arith.mulf %233, %231 : vector<8x128xf32>
    %235 = arith.mulf %225, %199 : vector<8x128xf32>
    %236 = arith.addf %234, %235 : vector<8x128xf32>
    %237 = arith.addi %8, %c4_i32 : i32
    %238 = vector.broadcast %237 : i32 to vector<8x1xi32>
    %239 = arith.cmpi slt, %238, %4 : vector<8x1xi32>
    %240 = arith.extui %239 : vector<8x1xi1> to vector<8x1xi32>
    %241 = arith.sitofp %240 : vector<8x1xi32> to vector<8x1xf32>
    %242 = vector.broadcast %241 : vector<8x1xf32> to vector<8x128xf32>
    %243 = arith.mulf %242, %236 : vector<8x128xf32>
    %cst_50 = arith.constant 1.000000e+00 : f32
    %244 = vector.broadcast %cst_50 : f32 to vector<8x1xf32>
    %245 = arith.subf %244, %241 : vector<8x1xf32>
    %246 = vector.broadcast %245 : vector<8x1xf32> to vector<8x128xf32>
    %247 = arith.mulf %246, %199 : vector<8x128xf32>
    %248 = arith.addf %243, %247 : vector<8x128xf32>
    %249 = vector.broadcast %241 : vector<8x1xf32> to vector<8x128xf32>
    %250 = arith.mulf %249, %236 : vector<8x128xf32>
    %251 = arith.index_cast %c4_i32 : i32 to index
    %c0_51 = arith.constant 0 : index
    %c0_52 = arith.constant 0 : index
    %252 = vector.load %arg6[%251, %c0_51, %c0_52] : memref<8x8x128xf32, #tpu.memory_space<vmem>>, vector<1x8x128xf32>
    %253 = vector.shape_cast %252 : vector<1x8x128xf32> to vector<8x128xf32>
    %254 = vector.shape_cast %250 : vector<8x128xf32> to vector<1x8x128xf32>
    tpu.vector_store %arg6[%251, %c0_51, %c0_52], %254 {strides = array<i32>} : memref<8x8x128xf32, #tpu.memory_space<vmem>>, vector<1x8x128xf32>,
    %c5_i32 = arith.constant 5 : i32
    %255 = arith.index_cast %c5_i32 : i32 to index
    %c0_53 = arith.constant 0 : index
    %c0_54 = arith.constant 0 : index
    %256 = vector.load %arg2[%255, %c0_53, %c0_54] : memref<8x8x384xf32, #tpu.memory_space<vmem>>, vector<1x8x384xf32>
    %257 = vector.shape_cast %256 : vector<1x8x384xf32> to vector<8x384xf32>
    %cst_55 = arith.constant dense<0.000000e+00> : vector<8x384xf32>
    %258 = tpu.matmul %248, %3, %cst_55 {dimension_numbers = #tpu.dot_dimension_numbers<[1], [0], [0], [1], [0, 0, 1, 1], [], []>} : vector<8x128xf32>, vector<128x384xf32>, vector<8x384xf32> -> vector<8x384xf32>
    %259 = vector.extract_strided_slice %257 {offsets = [0, 0], sizes = [8, 128], strides = [1, 1]} : vector<8x384xf32> to vector<8x128xf32>
    %260 = vector.extract_strided_slice %258 {offsets = [0, 0], sizes = [8, 128], strides = [1, 1]} : vector<8x384xf32> to vector<8x128xf32>
    %261 = arith.addf %259, %260 : vector<8x128xf32>
    %262 = arith.negf %261 : vector<8x128xf32>
    %263 = math.exp %262 : vector<8x128xf32>
    %cst_56 = arith.constant 1.000000e+00 : f32
    %264 = vector.broadcast %cst_56 : f32 to vector<8x128xf32>
    %265 = arith.addf %264, %263 : vector<8x128xf32>
    %266 = arith.divf %264, %265 : vector<8x128xf32>
    %267 = vector.extract_strided_slice %257 {offsets = [0, 128], sizes = [8, 128], strides = [1, 1]} : vector<8x384xf32> to vector<8x128xf32>
    %268 = vector.extract_strided_slice %258 {offsets = [0, 128], sizes = [8, 128], strides = [1, 1]} : vector<8x384xf32> to vector<8x128xf32>
    %269 = arith.addf %267, %268 : vector<8x128xf32>
    %270 = arith.negf %269 : vector<8x128xf32>
    %271 = math.exp %270 : vector<8x128xf32>
    %cst_57 = arith.constant 1.000000e+00 : f32
    %272 = vector.broadcast %cst_57 : f32 to vector<8x128xf32>
    %273 = arith.addf %272, %271 : vector<8x128xf32>
    %274 = arith.divf %272, %273 : vector<8x128xf32>
    %275 = vector.extract_strided_slice %257 {offsets = [0, 256], sizes = [8, 128], strides = [1, 1]} : vector<8x384xf32> to vector<8x128xf32>
    %276 = vector.extract_strided_slice %258 {offsets = [0, 256], sizes = [8, 128], strides = [1, 1]} : vector<8x384xf32> to vector<8x128xf32>
    %277 = arith.addf %276, %7 : vector<8x128xf32>
    %278 = arith.mulf %266, %277 : vector<8x128xf32>
    %279 = arith.addf %275, %278 : vector<8x128xf32>
    %280 = math.tanh %279 : vector<8x128xf32>
    %cst_58 = arith.constant 1.000000e+00 : f32
    %281 = vector.broadcast %cst_58 : f32 to vector<8x128xf32>
    %282 = arith.subf %281, %274 : vector<8x128xf32>
    %283 = arith.mulf %282, %280 : vector<8x128xf32>
    %284 = arith.mulf %274, %248 : vector<8x128xf32>
    %285 = arith.addf %283, %284 : vector<8x128xf32>
    %286 = arith.addi %8, %c5_i32 : i32
    %287 = vector.broadcast %286 : i32 to vector<8x1xi32>
    %288 = arith.cmpi slt, %287, %4 : vector<8x1xi32>
    %289 = arith.extui %288 : vector<8x1xi1> to vector<8x1xi32>
    %290 = arith.sitofp %289 : vector<8x1xi32> to vector<8x1xf32>
    %291 = vector.broadcast %290 : vector<8x1xf32> to vector<8x128xf32>
    %292 = arith.mulf %291, %285 : vector<8x128xf32>
    %cst_59 = arith.constant 1.000000e+00 : f32
    %293 = vector.broadcast %cst_59 : f32 to vector<8x1xf32>
    %294 = arith.subf %293, %290 : vector<8x1xf32>
    %295 = vector.broadcast %294 : vector<8x1xf32> to vector<8x128xf32>
    %296 = arith.mulf %295, %248 : vector<8x128xf32>
    %297 = arith.addf %292, %296 : vector<8x128xf32>
    %298 = vector.broadcast %290 : vector<8x1xf32> to vector<8x128xf32>
    %299 = arith.mulf %298, %285 : vector<8x128xf32>
    %300 = arith.index_cast %c5_i32 : i32 to index
    %c0_60 = arith.constant 0 : index
    %c0_61 = arith.constant 0 : index
    %301 = vector.load %arg6[%300, %c0_60, %c0_61] : memref<8x8x128xf32, #tpu.memory_space<vmem>>, vector<1x8x128xf32>
    %302 = vector.shape_cast %301 : vector<1x8x128xf32> to vector<8x128xf32>
    %303 = vector.shape_cast %299 : vector<8x128xf32> to vector<1x8x128xf32>
    tpu.vector_store %arg6[%300, %c0_60, %c0_61], %303 {strides = array<i32>} : memref<8x8x128xf32, #tpu.memory_space<vmem>>, vector<1x8x128xf32>,
    %c6_i32 = arith.constant 6 : i32
    %304 = arith.index_cast %c6_i32 : i32 to index
    %c0_62 = arith.constant 0 : index
    %c0_63 = arith.constant 0 : index
    %305 = vector.load %arg2[%304, %c0_62, %c0_63] : memref<8x8x384xf32, #tpu.memory_space<vmem>>, vector<1x8x384xf32>
    %306 = vector.shape_cast %305 : vector<1x8x384xf32> to vector<8x384xf32>
    %cst_64 = arith.constant dense<0.000000e+00> : vector<8x384xf32>
    %307 = tpu.matmul %297, %3, %cst_64 {dimension_numbers = #tpu.dot_dimension_numbers<[1], [0], [0], [1], [0, 0, 1, 1], [], []>} : vector<8x128xf32>, vector<128x384xf32>, vector<8x384xf32> -> vector<8x384xf32>
    %308 = vector.extract_strided_slice %306 {offsets = [0, 0], sizes = [8, 128], strides = [1, 1]} : vector<8x384xf32> to vector<8x128xf32>
    %309 = vector.extract_strided_slice %307 {offsets = [0, 0], sizes = [8, 128], strides = [1, 1]} : vector<8x384xf32> to vector<8x128xf32>
    %310 = arith.addf %308, %309 : vector<8x128xf32>
    %311 = arith.negf %310 : vector<8x128xf32>
    %312 = math.exp %311 : vector<8x128xf32>
    %cst_65 = arith.constant 1.000000e+00 : f32
    %313 = vector.broadcast %cst_65 : f32 to vector<8x128xf32>
    %314 = arith.addf %313, %312 : vector<8x128xf32>
    %315 = arith.divf %313, %314 : vector<8x128xf32>
    %316 = vector.extract_strided_slice %306 {offsets = [0, 128], sizes = [8, 128], strides = [1, 1]} : vector<8x384xf32> to vector<8x128xf32>
    %317 = vector.extract_strided_slice %307 {offsets = [0, 128], sizes = [8, 128], strides = [1, 1]} : vector<8x384xf32> to vector<8x128xf32>
    %318 = arith.addf %316, %317 : vector<8x128xf32>
    %319 = arith.negf %318 : vector<8x128xf32>
    %320 = math.exp %319 : vector<8x128xf32>
    %cst_66 = arith.constant 1.000000e+00 : f32
    %321 = vector.broadcast %cst_66 : f32 to vector<8x128xf32>
    %322 = arith.addf %321, %320 : vector<8x128xf32>
    %323 = arith.divf %321, %322 : vector<8x128xf32>
    %324 = vector.extract_strided_slice %306 {offsets = [0, 256], sizes = [8, 128], strides = [1, 1]} : vector<8x384xf32> to vector<8x128xf32>
    %325 = vector.extract_strided_slice %307 {offsets = [0, 256], sizes = [8, 128], strides = [1, 1]} : vector<8x384xf32> to vector<8x128xf32>
    %326 = arith.addf %325, %7 : vector<8x128xf32>
    %327 = arith.mulf %315, %326 : vector<8x128xf32>
    %328 = arith.addf %324, %327 : vector<8x128xf32>
    %329 = math.tanh %328 : vector<8x128xf32>
    %cst_67 = arith.constant 1.000000e+00 : f32
    %330 = vector.broadcast %cst_67 : f32 to vector<8x128xf32>
    %331 = arith.subf %330, %323 : vector<8x128xf32>
    %332 = arith.mulf %331, %329 : vector<8x128xf32>
    %333 = arith.mulf %323, %297 : vector<8x128xf32>
    %334 = arith.addf %332, %333 : vector<8x128xf32>
    %335 = arith.addi %8, %c6_i32 : i32
    %336 = vector.broadcast %335 : i32 to vector<8x1xi32>
    %337 = arith.cmpi slt, %336, %4 : vector<8x1xi32>
    %338 = arith.extui %337 : vector<8x1xi1> to vector<8x1xi32>
    %339 = arith.sitofp %338 : vector<8x1xi32> to vector<8x1xf32>
    %340 = vector.broadcast %339 : vector<8x1xf32> to vector<8x128xf32>
    %341 = arith.mulf %340, %334 : vector<8x128xf32>
    %cst_68 = arith.constant 1.000000e+00 : f32
    %342 = vector.broadcast %cst_68 : f32 to vector<8x1xf32>
    %343 = arith.subf %342, %339 : vector<8x1xf32>
    %344 = vector.broadcast %343 : vector<8x1xf32> to vector<8x128xf32>
    %345 = arith.mulf %344, %297 : vector<8x128xf32>
    %346 = arith.addf %341, %345 : vector<8x128xf32>
    %347 = vector.broadcast %339 : vector<8x1xf32> to vector<8x128xf32>
    %348 = arith.mulf %347, %334 : vector<8x128xf32>
    %349 = arith.index_cast %c6_i32 : i32 to index
    %c0_69 = arith.constant 0 : index
    %c0_70 = arith.constant 0 : index
    %350 = vector.load %arg6[%349, %c0_69, %c0_70] : memref<8x8x128xf32, #tpu.memory_space<vmem>>, vector<1x8x128xf32>
    %351 = vector.shape_cast %350 : vector<1x8x128xf32> to vector<8x128xf32>
    %352 = vector.shape_cast %348 : vector<8x128xf32> to vector<1x8x128xf32>
    tpu.vector_store %arg6[%349, %c0_69, %c0_70], %352 {strides = array<i32>} : memref<8x8x128xf32, #tpu.memory_space<vmem>>, vector<1x8x128xf32>,
    %c7_i32 = arith.constant 7 : i32
    %353 = arith.index_cast %c7_i32 : i32 to index
    %c0_71 = arith.constant 0 : index
    %c0_72 = arith.constant 0 : index
    %354 = vector.load %arg2[%353, %c0_71, %c0_72] : memref<8x8x384xf32, #tpu.memory_space<vmem>>, vector<1x8x384xf32>
    %355 = vector.shape_cast %354 : vector<1x8x384xf32> to vector<8x384xf32>
    %cst_73 = arith.constant dense<0.000000e+00> : vector<8x384xf32>
    %356 = tpu.matmul %346, %3, %cst_73 {dimension_numbers = #tpu.dot_dimension_numbers<[1], [0], [0], [1], [0, 0, 1, 1], [], []>} : vector<8x128xf32>, vector<128x384xf32>, vector<8x384xf32> -> vector<8x384xf32>
    %357 = vector.extract_strided_slice %355 {offsets = [0, 0], sizes = [8, 128], strides = [1, 1]} : vector<8x384xf32> to vector<8x128xf32>
    %358 = vector.extract_strided_slice %356 {offsets = [0, 0], sizes = [8, 128], strides = [1, 1]} : vector<8x384xf32> to vector<8x128xf32>
    %359 = arith.addf %357, %358 : vector<8x128xf32>
    %360 = arith.negf %359 : vector<8x128xf32>
    %361 = math.exp %360 : vector<8x128xf32>
    %cst_74 = arith.constant 1.000000e+00 : f32
    %362 = vector.broadcast %cst_74 : f32 to vector<8x128xf32>
    %363 = arith.addf %362, %361 : vector<8x128xf32>
    %364 = arith.divf %362, %363 : vector<8x128xf32>
    %365 = vector.extract_strided_slice %355 {offsets = [0, 128], sizes = [8, 128], strides = [1, 1]} : vector<8x384xf32> to vector<8x128xf32>
    %366 = vector.extract_strided_slice %356 {offsets = [0, 128], sizes = [8, 128], strides = [1, 1]} : vector<8x384xf32> to vector<8x128xf32>
    %367 = arith.addf %365, %366 : vector<8x128xf32>
    %368 = arith.negf %367 : vector<8x128xf32>
    %369 = math.exp %368 : vector<8x128xf32>
    %cst_75 = arith.constant 1.000000e+00 : f32
    %370 = vector.broadcast %cst_75 : f32 to vector<8x128xf32>
    %371 = arith.addf %370, %369 : vector<8x128xf32>
    %372 = arith.divf %370, %371 : vector<8x128xf32>
    %373 = vector.extract_strided_slice %355 {offsets = [0, 256], sizes = [8, 128], strides = [1, 1]} : vector<8x384xf32> to vector<8x128xf32>
    %374 = vector.extract_strided_slice %356 {offsets = [0, 256], sizes = [8, 128], strides = [1, 1]} : vector<8x384xf32> to vector<8x128xf32>
    %375 = arith.addf %374, %7 : vector<8x128xf32>
    %376 = arith.mulf %364, %375 : vector<8x128xf32>
    %377 = arith.addf %373, %376 : vector<8x128xf32>
    %378 = math.tanh %377 : vector<8x128xf32>
    %cst_76 = arith.constant 1.000000e+00 : f32
    %379 = vector.broadcast %cst_76 : f32 to vector<8x128xf32>
    %380 = arith.subf %379, %372 : vector<8x128xf32>
    %381 = arith.mulf %380, %378 : vector<8x128xf32>
    %382 = arith.mulf %372, %346 : vector<8x128xf32>
    %383 = arith.addf %381, %382 : vector<8x128xf32>
    %384 = arith.addi %8, %c7_i32 : i32
    %385 = vector.broadcast %384 : i32 to vector<8x1xi32>
    %386 = arith.cmpi slt, %385, %4 : vector<8x1xi32>
    %387 = arith.extui %386 : vector<8x1xi1> to vector<8x1xi32>
    %388 = arith.sitofp %387 : vector<8x1xi32> to vector<8x1xf32>
    %389 = vector.broadcast %388 : vector<8x1xf32> to vector<8x128xf32>
    %390 = arith.mulf %389, %383 : vector<8x128xf32>
    %cst_77 = arith.constant 1.000000e+00 : f32
    %391 = vector.broadcast %cst_77 : f32 to vector<8x1xf32>
    %392 = arith.subf %391, %388 : vector<8x1xf32>
    %393 = vector.broadcast %392 : vector<8x1xf32> to vector<8x128xf32>
    %394 = arith.mulf %393, %346 : vector<8x128xf32>
    %395 = arith.addf %390, %394 : vector<8x128xf32>
    %396 = vector.broadcast %388 : vector<8x1xf32> to vector<8x128xf32>
    %397 = arith.mulf %396, %383 : vector<8x128xf32>
    %398 = arith.index_cast %c7_i32 : i32 to index
    %c0_78 = arith.constant 0 : index
    %c0_79 = arith.constant 0 : index
    %399 = vector.load %arg6[%398, %c0_78, %c0_79] : memref<8x8x128xf32, #tpu.memory_space<vmem>>, vector<1x8x128xf32>
    %400 = vector.shape_cast %399 : vector<1x8x128xf32> to vector<8x128xf32>
    %401 = vector.shape_cast %397 : vector<8x128xf32> to vector<1x8x128xf32>
    tpu.vector_store %arg6[%398, %c0_78, %c0_79], %401 {strides = array<i32>} : memref<8x8x128xf32, #tpu.memory_space<vmem>>, vector<1x8x128xf32>,
    %c8_i32_80 = arith.constant 8 : i32
    %c0_81 = arith.constant 0 : index
    %c0_82 = arith.constant 0 : index
    %402 = vector.load %arg8[%c0_81, %c0_82] : memref<8x128xf32, #tpu.memory_space<vmem>>, vector<8x128xf32>
    tpu.vector_store %arg8[%c0_81, %c0_82], %395 {strides = array<i32>} : memref<8x128xf32, #tpu.memory_space<vmem>>, vector<8x128xf32>,
    %c0_i32_83 = arith.constant 0 : i32
    %403 = arith.cmpi eq, %arg1, %c0_i32_83 : i32
    %404 = arith.extui %403 : i1 to i32
    %c0_i32_84 = arith.constant 0 : i32
    %405 = arith.cmpi ne, %404, %c0_i32_84 : i32
    scf.if %405 {
      %c0_85 = arith.constant 0 : index
      %c0_86 = arith.constant 0 : index
      %406 = vector.load %arg7[%c0_85, %c0_86] : memref<8x128xf32, #tpu.memory_space<vmem>>, vector<8x128xf32>
      tpu.vector_store %arg7[%c0_85, %c0_86], %395 {strides = array<i32>} : memref<8x128xf32, #tpu.memory_space<vmem>>, vector<8x128xf32>,
    } else {
    }
    return
  }
  func.func @transform_0(%arg0: i32, %arg1: i32) -> (i32, i32, i32) {
    %c0_i32 = arith.constant 0 : i32
    %c0_i32_0 = arith.constant 0 : i32
    return %arg1, %arg0, %c0_i32 : i32, i32, i32
  }
  func.func @transform_1(%arg0: i32, %arg1: i32) -> (i32, i32) {
    %c0_i32 = arith.constant 0 : i32
    %c0_i32_0 = arith.constant 0 : i32
    return %arg0, %c0_i32 : i32, i32
  }
  func.func @transform_2(%arg0: i32, %arg1: i32) -> (i32, i32) {
    %c0_i32 = arith.constant 0 : i32
    %c0_i32_0 = arith.constant 0 : i32
    %c0_i32_1 = arith.constant 0 : i32
    return %c0_i32, %c0_i32_0 : i32, i32
  }
  func.func @transform_3(%arg0: i32, %arg1: i32) -> (i32, i32) {
    %c0_i32 = arith.constant 0 : i32
    %c0_i32_0 = arith.constant 0 : i32
    %c0_i32_1 = arith.constant 0 : i32
    return %c0_i32, %c0_i32_0 : i32, i32
  }
  func.func @transform_4(%arg0: i32, %arg1: i32) -> (i32, i32, i32) {
    %c0_i32 = arith.constant 0 : i32
    %c0_i32_0 = arith.constant 0 : i32
    return %arg1, %arg0, %c0_i32 : i32, i32, i32
  }
  func.func @transform_5(%arg0: i32, %arg1: i32) -> (i32, i32) {
    %c0_i32 = arith.constant 0 : i32
    %c0_i32_0 = arith.constant 0 : i32
    return %arg0, %c0_i32 : i32, i32
  }
}

</mosaic_0001>

<llo_original>
// kernel: encoder_forward.1
$region0: #{encoder_forward.1}
  #allocation0 [shape = 'u32[]', space=smem, size = 0x4, offset = 0x4, fixed_abs, tag = 'smem constant byte address 0x4 - core index']
  #allocation1 [shape = 'u32[144,128]{1,0:T(1,128)}', space=vmem, size = 0x12000, scoped, tag = 'internal scratch']
  #allocation2 [shape = 'f32[8,128]{1,0:T(8,128)}', space=vmem, size = 0x1000, scoped, tag = 'scratch operand']
  %s0 = inlined_call_operand.vmem [shape: f32[8,8,384], index: 0, kind: input, shape index: {}]
  %s1 = inlined_call_operand.vmem [shape: s32[8,1], index: 1, kind: input, shape index: {}]
  %s2 = inlined_call_operand.vmem [shape: f32[128,384], index: 2, kind: input, shape index: {}]
  %s3 = inlined_call_operand.vmem [shape: f32[1,128], index: 3, kind: input, shape index: {}]
  %s4 = inlined_call_operand.vmem [shape: f32[8,8,128], index: 4, kind: output, shape index: {0}]
  %s5 = inlined_call_operand.vmem [shape: f32[8,128], index: 5, kind: output, shape index: {1}]
  %6 = xla_tuple %s4, %s5
  %s7 = sld [smem:[#allocation0]]
  $region42: #{encoder_forward.1} parent=0
    _
  %s9 = ssub.s32 1, %s7
  %s10 = scalar_select 0, %s9, %s7
  // Predicated region
  $region2: #{encoder_forward.1} parent=0 // pred_check
    _
  $region3: #{encoder_forward.1} parent=0 // pred_check_branch
    %12 = sbr.rel (0) target = $region5
  $region4: #{encoder_forward.1} parent=0 // pred_region
    _
  $region5: #{encoder_forward.1} parent=0 // pred_fallthru
    _
  // Predicated region
  $region6: #{encoder_forward.1} parent=0 // pred_check
    _
  $region7: #{encoder_forward.1} parent=0 // pred_check_branch
    %14 = sbr.rel (0) target = $region9
  $region8: #{encoder_forward.1} parent=0 // pred_region
    _
  $region9: #{encoder_forward.1} parent=0 // pred_fallthru
    _
  // Predicated region
  $region10: #{encoder_forward.1} parent=0 // pred_check
    _
  $region11: #{encoder_forward.1} parent=0 // pred_check_branch
    %16 = sbr.rel (0) target = $region13
  $region12: #{encoder_forward.1} parent=0 // pred_region
    _
  $region13: #{encoder_forward.1} parent=0 // pred_fallthru
    _
  // Predicated region
  $region14: #{encoder_forward.1} parent=0 // pred_check
    _
  $region15: #{encoder_forward.1} parent=0 // pred_check_branch
    %18 = sbr.rel (0) target = $region17
  $region16: #{encoder_forward.1} parent=0 // pred_region
    _
  $region17: #{encoder_forward.1} parent=0 // pred_fallthru
    _
  %p19 = scmp.eq.s32.totalorder 0, 0
  // Predicated region
  $region18: #{encoder_forward.1} parent=0 // pred_check
    %p20 = pneg %p19
  $region19: #{encoder_forward.1} parent=0 // pred_check_branch
    %22 = sbr.rel (%p20) target = $region21
  $region20: #{encoder_forward.1} parent=0 // pred_region
    %23 = vst [vmem:[#allocation2] sm:$0xff] 0.0
  $region21: #{encoder_forward.1} parent=0 // pred_fallthru
    _
  %v24 = vld [vmem:[%s2] sm:$0xff]
  %v25 = vld [vmem:[%s2 + $0x8] sm:$0xff]
  %v26 = vld [vmem:[%s2 + $0x10] sm:$0xff]
  %v27 = vld [vmem:[%s2 + $0x18] sm:$0xff]
  %v28 = vld [vmem:[%s2 + $0x20] sm:$0xff]
  %v29 = vld [vmem:[%s2 + $0x28] sm:$0xff]
  %v30 = vld [vmem:[%s2 + $0x30] sm:$0xff]
  %v31 = vld [vmem:[%s2 + $0x38] sm:$0xff]
  %v32 = vld [vmem:[%s2 + $0x40] sm:$0xff]
  %v33 = vld [vmem:[%s2 + $0x48] sm:$0xff]
  %v34 = vld [vmem:[%s2 + $0x50] sm:$0xff]
  %v35 = vld [vmem:[%s2 + $0x58] sm:$0xff]
  %v36 = vld [vmem:[%s2 + $0x60] sm:$0xff]
  %v37 = vld [vmem:[%s2 + $0x68] sm:$0xff]
  %v38 = vld [vmem:[%s2 + $0x70] sm:$0xff]
  %v39 = vld [vmem:[%s2 + $0x78] sm:$0xff]
  %v40 = vld [vmem:[%s2 + $0x80] sm:$0xff]
  %v41 = vld [vmem:[%s2 + $0x88] sm:$0xff]
  %v42 = vld [vmem:[%s2 + $0x90] sm:$0xff]
  %v43 = vld [vmem:[%s2 + $0x98] sm:$0xff]
  %v44 = vld [vmem:[%s2 + $0xa0] sm:$0xff]
  %v45 = vld [vmem:[%s2 + $0xa8] sm:$0xff]
  %v46 = vld [vmem:[%s2 + $0xb0] sm:$0xff]
  %v47 = vld [vmem:[%s2 + $0xb8] sm:$0xff]
  %v48 = vld [vmem:[%s2 + $0xc0] sm:$0xff]
  %v49 = vld [vmem:[%s2 + $0xc8] sm:$0xff]
  %v50 = vld [vmem:[%s2 + $0xd0] sm:$0xff]
  %v51 = vld [vmem:[%s2 + $0xd8] sm:$0xff]
  %v52 = vld [vmem:[%s2 + $0xe0] sm:$0xff]
  %v53 = vld [vmem:[%s2 + $0xe8] sm:$0xff]
  %v54 = vld [vmem:[%s2 + $0xf0] sm:$0xff]
  %v55 = vld [vmem:[%s2 + $0xf8] sm:$0xff]
  %v56 = vld [vmem:[%s2 + $0x100] sm:$0xff]
  %v57 = vld [vmem:[%s2 + $0x108] sm:$0xff]
  %v58 = vld [vmem:[%s2 + $0x110] sm:$0xff]
  %v59 = vld [vmem:[%s2 + $0x118] sm:$0xff]
  %v60 = vld [vmem:[%s2 + $0x120] sm:$0xff]
  %v61 = vld [vmem:[%s2 + $0x128] sm:$0xff]
  %v62 = vld [vmem:[%s2 + $0x130] sm:$0xff]
  %v63 = vld [vmem:[%s2 + $0x138] sm:$0xff]
  %v64 = vld [vmem:[%s2 + $0x140] sm:$0xff]
  %v65 = vld [vmem:[%s2 + $0x148] sm:$0xff]
  %v66 = vld [vmem:[%s2 + $0x150] sm:$0xff]
  %v67 = vld [vmem:[%s2 + $0x158] sm:$0xff]
  %v68 = vld [vmem:[%s2 + $0x160] sm:$0xff]
  %v69 = vld [vmem:[%s2 + $0x168] sm:$0xff]
  %v70 = vld [vmem:[%s2 + $0x170] sm:$0xff]
  %v71 = vld [vmem:[%s2 + $0x178] sm:$0xff]
  %v72 = vld [vmem:[%s1] sm:$0xff]
  %v73 = vld [vmem:[%s3] sm:$0x1]
  %v75 = vlaneseq
  %v76 = vshrl.u32 %v75, 7
  %v77 = vsub.s32 0, %v76
  %v78 = vrot.slane %v73, %v77
  %s80 = smul.u32 0, 8
  %v81 = vld [vmem:[#allocation2] sm:$0xff]
  %v82 = vld [vmem:[%s0] sm:$0xff]
  %v83 = vld [vmem:[%s0 + $0x8] sm:$0xff]
  %v84 = vld [vmem:[%s0 + $0x10] sm:$0xff]
  %85 = vmatprep.subr.mxu0 %v25
  %86 = vmatpush1.msra.mxu0 %v24
  %87 = vmatprep.subr.mxu0 %v28
  %88 = vmatpush1.msra.mxu0 %v27
  %89 = vmatprep.subr.mxu0 %v31
  %90 = vmatpush1.msra.mxu0 %v30
  %91 = vmatprep.subr.mxu0 %v34
  %92 = vmatpush1.msra.mxu0 %v33
  %93 = vmatprep.subr.mxu0 %v37
  %94 = vmatpush1.msra.mxu0 %v36
  %95 = vmatprep.subr.mxu0 %v40
  %96 = vmatpush1.msra.mxu0 %v39
  %97 = vmatprep.subr.mxu0 %v43
  %98 = vmatpush1.msra.mxu0 %v42
  %99 = vmatprep.subr.mxu0 %v46
  %100 = vmatpush1.msra.mxu0 %v45
  %101 = vmatprep.subr.mxu0 %v49
  %102 = vmatpush1.msra.mxu0 %v48
  %103 = vmatprep.subr.mxu0 %v52
  %104 = vmatpush1.msra.mxu0 %v51
  %105 = vmatprep.subr.mxu0 %v55
  %106 = vmatpush1.msra.mxu0 %v54
  %107 = vmatprep.subr.mxu0 %v58
  %108 = vmatpush1.msra.mxu0 %v57
  %109 = vmatprep.subr.mxu0 %v61
  %110 = vmatpush1.msra.mxu0 %v60
  %111 = vmatprep.subr.mxu0 %v64
  %112 = vmatpush1.msra.mxu0 %v63
  %113 = vmatprep.subr.mxu0 %v67
  %114 = vmatpush1.msra.mxu0 %v66
  %115 = vmatprep.subr.mxu0 %v70
  %116 = vmatpush1.msra.mxu0 %v69
  %117 = vmatprep.subr.mxu0 0.0
  %118 = vmatpush1.msra.mxu0 0.0
  %119 = vmatprep.subr.mxu0 0.0
  %120 = vmatpush1.msra.mxu0 0.0
  %121 = vmatprep.subr.mxu0 0.0
  %122 = vmatpush1.msra.mxu0 0.0
  %123 = vmatprep.subr.mxu0 0.0
  %124 = vmatpush1.msra.mxu0 0.0
  %125 = vmatprep.subr.mxu0 0.0
  %126 = vmatpush1.msra.mxu0 0.0
  %127 = vmatprep.subr.mxu0 0.0
  %128 = vmatpush1.msra.mxu0 0.0
  %129 = vmatprep.subr.mxu0 0.0
  %130 = vmatpush1.msra.mxu0 0.0
  %131 = vmatprep.subr.mxu0 0.0
  %132 = vmatpush1.msra.mxu0 0.0
  %133 = vmatprep.subr.mxu0 0.0
  %134 = vmatpush1.msra.mxu0 0.0
  %135 = vmatprep.subr.mxu0 0.0
  %136 = vmatpush1.msra.mxu0 0.0
  %137 = vmatprep.subr.mxu0 0.0
  %138 = vmatpush1.msra.mxu0 0.0
  %139 = vmatprep.subr.mxu0 0.0
  %140 = vmatpush1.msra.mxu0 0.0
  %141 = vmatprep.subr.mxu0 0.0
  %142 = vmatpush1.msra.mxu0 0.0
  %143 = vmatprep.subr.mxu0 0.0
  %144 = vmatpush1.msra.mxu0 0.0
  %145 = vmatprep.subr.mxu0 0.0
  %146 = vmatpush1.msra.mxu0 0.0
  %147 = vmatprep.subr.mxu0 0.0
  %148 = vmatpush1.msra.mxu0 0.0
  %149 = vmatprep.mubr.f32.mxu0 0.0
  %150 = vmatmul.mubr.f32.gmra.mrb[0].mxu0 %v81
  %v151 = vpop.f32.mrb[0].mxu0
  %v152 = vadd.f32 0.0, %v151
  %v153 = vpop.f32.mrb[0].mxu0
  %v154 = vadd.f32 0.0, %v153
  %155 = vdwg.mxu0
  %156 = vmatprep.subr.mxu0 0.0
  %157 = vmatpush1.msra.mxu0 %v26
  %158 = vmatprep.subr.mxu0 0.0
  %159 = vmatpush1.msra.mxu0 %v29
  %160 = vmatprep.subr.mxu0 0.0
  %161 = vmatpush1.msra.mxu0 %v32
  %162 = vmatprep.subr.mxu0 0.0
  %163 = vmatpush1.msra.mxu0 %v35
  %164 = vmatprep.subr.mxu0 0.0
  %165 = vmatpush1.msra.mxu0 %v38
  %166 = vmatprep.subr.mxu0 0.0
  %167 = vmatpush1.msra.mxu0 %v41
  %168 = vmatprep.subr.mxu0 0.0
  %169 = vmatpush1.msra.mxu0 %v44
  %170 = vmatprep.subr.mxu0 0.0
  %171 = vmatpush1.msra.mxu0 %v47
  %172 = vmatprep.subr.mxu0 0.0
  %173 = vmatpush1.msra.mxu0 %v50
  %174 = vmatprep.subr.mxu0 0.0
  %175 = vmatpush1.msra.mxu0 %v53
  %176 = vmatprep.subr.mxu0 0.0
  %177 = vmatpush1.msra.mxu0 %v56
  %178 = vmatprep.subr.mxu0 0.0
  %179 = vmatpush1.msra.mxu0 %v59
  %180 = vmatprep.subr.mxu0 0.0
  %181 = vmatpush1.msra.mxu0 %v62
  %182 = vmatprep.subr.mxu0 0.0
  %183 = vmatpush1.msra.mxu0 %v65
  %184 = vmatprep.subr.mxu0 0.0
  %185 = vmatpush1.msra.mxu0 %v68
  %186 = vmatprep.subr.mxu0 0.0
  %187 = vmatpush1.msra.mxu0 %v71
  %188 = vmatprep.subr.mxu0 0.0
  %189 = vmatpush1.msra.mxu0 0.0
  %190 = vmatprep.subr.mxu0 0.0
  %191 = vmatpush1.msra.mxu0 0.0
  %192 = vmatprep.subr.mxu0 0.0
  %193 = vmatpush1.msra.mxu0 0.0
  %194 = vmatprep.subr.mxu0 0.0
  %195 = vmatpush1.msra.mxu0 0.0
  %196 = vmatprep.subr.mxu0 0.0
  %197 = vmatpush1.msra.mxu0 0.0
  %198 = vmatprep.subr.mxu0 0.0
  %199 = vmatpush1.msra.mxu0 0.0
  %200 = vmatprep.subr.mxu0 0.0
  %201 = vmatpush1.msra.mxu0 0.0
  %202 = vmatprep.subr.mxu0 0.0
  %203 = vmatpush1.msra.mxu0 0.0
  %204 = vmatprep.subr.mxu0 0.0
  %205 = vmatpush1.msra.mxu0 0.0
  %206 = vmatprep.subr.mxu0 0.0
  %207 = vmatpush1.msra.mxu0 0.0
  %208 = vmatprep.subr.mxu0 0.0
  %209 = vmatpush1.msra.mxu0 0.0
  %210 = vmatprep.subr.mxu0 0.0
  %211 = vmatpush1.msra.mxu0 0.0
  %212 = vmatprep.subr.mxu0 0.0
  %213 = vmatpush1.msra.mxu0 0.0
  %214 = vmatprep.subr.mxu0 0.0
  %215 = vmatpush1.msra.mxu0 0.0
  %216 = vmatprep.subr.mxu0 0.0
  %217 = vmatpush1.msra.mxu0 0.0
  %218 = vmatprep.subr.mxu0 0.0
  %219 = vmatpush1.msra.mxu0 0.0
  %220 = vmatprep.mubr.f32.mxu0 0.0
  %221 = vmatmul.mubr.f32.gmra.mrb[0].mxu0 %v81
  %v222 = vpop.f32.mrb[0].mxu0
  %v223 = vadd.f32 0.0, %v222
  %v224 = vpop.f32.mrb[0].mxu0
  %225 = vdwg.mxu0
  %v226 = vadd.f32 %v82, %v152
  %v227 = vxor.u32 %v226, 2147483648
  %v228 = vmul.f32 %v227, 1.442695
  %v229 = vpow.pop %v228
  %v230 = vadd.f32 %v229, 1.0
  %v231 = vrcp.pop %v230
  %v232 = vmul.f32 1.0, %v231
  %v233 = vadd.f32 %v83, %v154
  %v234 = vxor.u32 %v233, 2147483648
  %v235 = vmul.f32 %v234, 1.442695
  %v236 = vpow.pop %v235
  %v237 = vadd.f32 %v236, 1.0
  %v238 = vrcp.pop %v237
  %v239 = vmul.f32 1.0, %v238
  %v240 = vadd.f32 %v223, %v78
  %v241 = vmul.f32 %v232, %v240
  %v242 = vadd.f32 %v84, %v241
  %v243 = vtanh.pop %v242
  %v244 = vsub.f32 1.0, %v239
  %v245 = vmul.f32 %v244, %v243
  %v246 = vmul.f32 %v239, %v81
  %v247 = vadd.f32 %v245, %v246
  %v248 = vstv %s80
  %vm249 = vcmp.lt.s32.totalorder %v248, %v72
  %v250 = vsel %vm249, 1, 0
  %v251 = vcvt.s32.f32 %v250
  %253 = vset.pattern.permute.xlu0 0
  %254 = vperm.xlu0 %253, %v251
  %v255 = vpop.permute.xlu0 %254
  %v257 = vmul.f32 %v255, %v247
  %v258 = vsub.f32 1.0, %v251
  %260 = vset.pattern.permute.xlu0 0
  %261 = vperm.xlu0 %260, %v258
  %v262 = vpop.permute.xlu0 %261
  %v264 = vmul.f32 %v262, %v81
  %v265 = vadd.f32 %v257, %v264
  %266 = vst [vmem:[%s4] sm:$0xff] %v257
  %s267 = scalar_lea.vmem %s0, 24
  %v268 = vld [vmem:[%s267] sm:$0xff]
  %v269 = vld [vmem:[%s267 + $0x8] sm:$0xff]
  %v270 = vld [vmem:[%s267 + $0x10] sm:$0xff]
  %271 = vmatprep.subr.mxu0 %v25
  %272 = vmatpush1.msra.mxu0 %v24
  %273 = vmatprep.subr.mxu0 %v28
  %274 = vmatpush1.msra.mxu0 %v27
  %275 = vmatprep.subr.mxu0 %v31
  %276 = vmatpush1.msra.mxu0 %v30
  %277 = vmatprep.subr.mxu0 %v34
  %278 = vmatpush1.msra.mxu0 %v33
  %279 = vmatprep.subr.mxu0 %v37
  %280 = vmatpush1.msra.mxu0 %v36
  %281 = vmatprep.subr.mxu0 %v40
  %282 = vmatpush1.msra.mxu0 %v39
  %283 = vmatprep.subr.mxu0 %v43
  %284 = vmatpush1.msra.mxu0 %v42
  %285 = vmatprep.subr.mxu0 %v46
  %286 = vmatpush1.msra.mxu0 %v45
  %287 = vmatprep.subr.mxu0 %v49
  %288 = vmatpush1.msra.mxu0 %v48
  %289 = vmatprep.subr.mxu0 %v52
  %290 = vmatpush1.msra.mxu0 %v51
  %291 = vmatprep.subr.mxu0 %v55
  %292 = vmatpush1.msra.mxu0 %v54
  %293 = vmatprep.subr.mxu0 %v58
  %294 = vmatpush1.msra.mxu0 %v57
  %295 = vmatprep.subr.mxu0 %v61
  %296 = vmatpush1.msra.mxu0 %v60
  %297 = vmatprep.subr.mxu0 %v64
  %298 = vmatpush1.msra.mxu0 %v63
  %299 = vmatprep.subr.mxu0 %v67
  %300 = vmatpush1.msra.mxu0 %v66
  %301 = vmatprep.subr.mxu0 %v70
  %302 = vmatpush1.msra.mxu0 %v69
  %303 = vmatprep.subr.mxu0 0.0
  %304 = vmatpush1.msra.mxu0 0.0
  %305 = vmatprep.subr.mxu0 0.0
  %306 = vmatpush1.msra.mxu0 0.0
  %307 = vmatprep.subr.mxu0 0.0
  %308 = vmatpush1.msra.mxu0 0.0
  %309 = vmatprep.subr.mxu0 0.0
  %310 = vmatpush1.msra.mxu0 0.0
  %311 = vmatprep.subr.mxu0 0.0
  %312 = vmatpush1.msra.mxu0 0.0
  %313 = vmatprep.subr.mxu0 0.0
  %314 = vmatpush1.msra.mxu0 0.0
  %315 = vmatprep.subr.mxu0 0.0
  %316 = vmatpush1.msra.mxu0 0.0
  %317 = vmatprep.subr.mxu0 0.0
  %318 = vmatpush1.msra.mxu0 0.0
  %319 = vmatprep.subr.mxu0 0.0
  %320 = vmatpush1.msra.mxu0 0.0
  %321 = vmatprep.subr.mxu0 0.0
  %322 = vmatpush1.msra.mxu0 0.0
  %323 = vmatprep.subr.mxu0 0.0
  %324 = vmatpush1.msra.mxu0 0.0
  %325 = vmatprep.subr.mxu0 0.0
  %326 = vmatpush1.msra.mxu0 0.0
  %327 = vmatprep.subr.mxu0 0.0
  %328 = vmatpush1.msra.mxu0 0.0
  %329 = vmatprep.subr.mxu0 0.0
  %330 = vmatpush1.msra.mxu0 0.0
  %331 = vmatprep.subr.mxu0 0.0
  %332 = vmatpush1.msra.mxu0 0.0
  %333 = vmatprep.subr.mxu0 0.0
  %334 = vmatpush1.msra.mxu0 0.0
  %335 = vmatprep.mubr.f32.mxu0 0.0
  %336 = vmatmul.mubr.f32.gmra.mrb[0].mxu0 %v265
  %v337 = vpop.f32.mrb[0].mxu0
  %v338 = vadd.f32 0.0, %v337
  %v339 = vpop.f32.mrb[0].mxu0
  %v340 = vadd.f32 0.0, %v339
  %341 = vdwg.mxu0
  %342 = vmatprep.subr.mxu0 0.0
  %343 = vmatpush1.msra.mxu0 %v26
  %344 = vmatprep.subr.mxu0 0.0
  %345 = vmatpush1.msra.mxu0 %v29
  %346 = vmatprep.subr.mxu0 0.0
  %347 = vmatpush1.msra.mxu0 %v32
  %348 = vmatprep.subr.mxu0 0.0
  %349 = vmatpush1.msra.mxu0 %v35
  %350 = vmatprep.subr.mxu0 0.0
  %351 = vmatpush1.msra.mxu0 %v38
  %352 = vmatprep.subr.mxu0 0.0
  %353 = vmatpush1.msra.mxu0 %v41
  %354 = vmatprep.subr.mxu0 0.0
  %355 = vmatpush1.msra.mxu0 %v44
  %356 = vmatprep.subr.mxu0 0.0
  %357 = vmatpush1.msra.mxu0 %v47
  %358 = vmatprep.subr.mxu0 0.0
  %359 = vmatpush1.msra.mxu0 %v50
  %360 = vmatprep.subr.mxu0 0.0
  %361 = vmatpush1.msra.mxu0 %v53
  %362 = vmatprep.subr.mxu0 0.0
  %363 = vmatpush1.msra.mxu0 %v56
  %364 = vmatprep.subr.mxu0 0.0
  %365 = vmatpush1.msra.mxu0 %v59
  %366 = vmatprep.subr.mxu0 0.0
  %367 = vmatpush1.msra.mxu0 %v62
  %368 = vmatprep.subr.mxu0 0.0
  %369 = vmatpush1.msra.mxu0 %v65
  %370 = vmatprep.subr.mxu0 0.0
  %371 = vmatpush1.msra.mxu0 %v68
  %372 = vmatprep.subr.mxu0 0.0
  %373 = vmatpush1.msra.mxu0 %v71
  %374 = vmatprep.subr.mxu0 0.0
  %375 = vmatpush1.msra.mxu0 0.0
  %376 = vmatprep.subr.mxu0 0.0
  %377 = vmatpush1.msra.mxu0 0.0
  %378 = vmatprep.subr.mxu0 0.0
  %379 = vmatpush1.msra.mxu0 0.0
  %380 = vmatprep.subr.mxu0 0.0
  %381 = vmatpush1.msra.mxu0 0.0
  %382 = vmatprep.subr.mxu0 0.0
  %383 = vmatpush1.msra.mxu0 0.0
  %384 = vmatprep.subr.mxu0 0.0
  %385 = vmatpush1.msra.mxu0 0.0
  %386 = vmatprep.subr.mxu0 0.0
  %387 = vmatpush1.msra.mxu0 0.0
  %388 = vmatprep.subr.mxu0 0.0
  %389 = vmatpush1.msra.mxu0 0.0
  %390 = vmatprep.subr.mxu0 0.0
  %391 = vmatpush1.msra.mxu0 0.0
  %392 = vmatprep.subr.mxu0 0.0
  %393 = vmatpush1.msra.mxu0 0.0
  %394 = vmatprep.subr.mxu0 0.0
  %395 = vmatpush1.msra.mxu0 0.0
  %396 = vmatprep.subr.mxu0 0.0
  %397 = vmatpush1.msra.mxu0 0.0
  %398 = vmatprep.subr.mxu0 0.0
  %399 = vmatpush1.msra.mxu0 0.0
  %400 = vmatprep.subr.mxu0 0.0
  %401 = vmatpush1.msra.mxu0 0.0
  %402 = vmatprep.subr.mxu0 0.0
  %403 = vmatpush1.msra.mxu0 0.0
  %404 = vmatprep.subr.mxu0 0.0
  %405 = vmatpush1.msra.mxu0 0.0
  %406 = vmatprep.mubr.f32.mxu0 0.0
  %407 = vmatmul.mubr.f32.gmra.mrb[0].mxu0 %v265
  %v408 = vpop.f32.mrb[0].mxu0
  %v409 = vadd.f32 0.0, %v408
  %v410 = vpop.f32.mrb[0].mxu0
  %411 = vdwg.mxu0
  %v412 = vadd.f32 %v268, %v338
  %v413 = vxor.u32 %v412, 2147483648
  %v414 = vmul.f32 %v413, 1.442695
  %v415 = vpow.pop %v414
  %v416 = vadd.f32 %v415, 1.0
  %v417 = vrcp.pop %v416
  %v418 = vmul.f32 1.0, %v417
  %v419 = vadd.f32 %v269, %v340
  %v420 = vxor.u32 %v419, 2147483648
  %v421 = vmul.f32 %v420, 1.442695
  %v422 = vpow.pop %v421
  %v423 = vadd.f32 %v422, 1.0
  %v424 = vrcp.pop %v423
  %v425 = vmul.f32 1.0, %v424
  %v426 = vadd.f32 %v409, %v78
  %v427 = vmul.f32 %v418, %v426
  %v428 = vadd.f32 %v270, %v427
  %v429 = vtanh.pop %v428
  %v430 = vsub.f32 1.0, %v425
  %v431 = vmul.f32 %v430, %v429
  %v432 = vmul.f32 %v425, %v265
  %v433 = vadd.f32 %v431, %v432
  %s434 = sadd.s32 %s80, 1
  %v435 = vstv %s434
  %vm436 = vcmp.lt.s32.totalorder %v435, %v72
  %v437 = vsel %vm436, 1, 0
  %v438 = vcvt.s32.f32 %v437
  %440 = vset.pattern.permute.xlu0 0
  %441 = vperm.xlu0 %440, %v438
  %v442 = vpop.permute.xlu0 %441
  %v444 = vmul.f32 %v442, %v433
  %v445 = vsub.f32 1.0, %v438
  %447 = vset.pattern.permute.xlu0 0
  %448 = vperm.xlu0 %447, %v445
  %v449 = vpop.permute.xlu0 %448
  %v451 = vmul.f32 %v449, %v265
  %v452 = vadd.f32 %v444, %v451
  %s453 = scalar_lea.vmem %s4, 8
  %454 = vst [vmem:[%s453] sm:$0xff] %v444
  %s455 = scalar_lea.vmem %s0, 48
  %v456 = vld [vmem:[%s455] sm:$0xff]
  %v457 = vld [vmem:[%s455 + $0x8] sm:$0xff]
  %v458 = vld [vmem:[%s455 + $0x10] sm:$0xff]
  %459 = vmatprep.subr.mxu0 %v25
  %460 = vmatpush1.msra.mxu0 %v24
  %461 = vmatprep.subr.mxu0 %v28
  %462 = vmatpush1.msra.mxu0 %v27
  %463 = vmatprep.subr.mxu0 %v31
  %464 = vmatpush1.msra.mxu0 %v30
  %465 = vmatprep.subr.mxu0 %v34
  %466 = vmatpush1.msra.mxu0 %v33
  %467 = vmatprep.subr.mxu0 %v37
  %468 = vmatpush1.msra.mxu0 %v36
  %469 = vmatprep.subr.mxu0 %v40
  %470 = vmatpush1.msra.mxu0 %v39
  %471 = vmatprep.subr.mxu0 %v43
  %472 = vmatpush1.msra.mxu0 %v42
  %473 = vmatprep.subr.mxu0 %v46
  %474 = vmatpush1.msra.mxu0 %v45
  %475 = vmatprep.subr.mxu0 %v49
  %476 = vmatpush1.msra.mxu0 %v48
  %477 = vmatprep.subr.mxu0 %v52
  %478 = vmatpush1.msra.mxu0 %v51
  %479 = vmatprep.subr.mxu0 %v55
  %480 = vmatpush1.msra.mxu0 %v54
  %481 = vmatprep.subr.mxu0 %v58
  %482 = vmatpush1.msra.mxu0 %v57
  %483 = vmatprep.subr.mxu0 %v61
  %484 = vmatpush1.msra.mxu0 %v60
  %485 = vmatprep.subr.mxu0 %v64
  %486 = vmatpush1.msra.mxu0 %v63
  %487 = vmatprep.subr.mxu0 %v67
  %488 = vmatpush1.msra.mxu0 %v66
  %489 = vmatprep.subr.mxu0 %v70
  %490 = vmatpush1.msra.mxu0 %v69
  %491 = vmatprep.subr.mxu0 0.0
  %492 = vmatpush1.msra.mxu0 0.0
  %493 = vmatprep.subr.mxu0 0.0
  %494 = vmatpush1.msra.mxu0 0.0
  %495 = vmatprep.subr.mxu0 0.0
  %496 = vmatpush1.msra.mxu0 0.0
  %497 = vmatprep.subr.mxu0 0.0
  %498 = vmatpush1.msra.mxu0 0.0
  %499 = vmatprep.subr.mxu0 0.0
  %500 = vmatpush1.msra.mxu0 0.0
  %501 = vmatprep.subr.mxu0 0.0
  %502 = vmatpush1.msra.mxu0 0.0
  %503 = vmatprep.subr.mxu0 0.0
  %504 = vmatpush1.msra.mxu0 0.0
  %505 = vmatprep.subr.mxu0 0.0
  %506 = vmatpush1.msra.mxu0 0.0
  %507 = vmatprep.subr.mxu0 0.0
  %508 = vmatpush1.msra.mxu0 0.0
  %509 = vmatprep.subr.mxu0 0.0
  %510 = vmatpush1.msra.mxu0 0.0
  %511 = vmatprep.subr.mxu0 0.0
  %512 = vmatpush1.msra.mxu0 0.0
  %513 = vmatprep.subr.mxu0 0.0
  %514 = vmatpush1.msra.mxu0 0.0
  %515 = vmatprep.subr.mxu0 0.0
  %516 = vmatpush1.msra.mxu0 0.0
  %517 = vmatprep.subr.mxu0 0.0
  %518 = vmatpush1.msra.mxu0 0.0
  %519 = vmatprep.subr.mxu0 0.0
  %520 = vmatpush1.msra.mxu0 0.0
  %521 = vmatprep.subr.mxu0 0.0
  %522 = vmatpush1.msra.mxu0 0.0
  %523 = vmatprep.mubr.f32.mxu0 0.0
  %524 = vmatmul.mubr.f32.gmra.mrb[0].mxu0 %v452
  %v525 = vpop.f32.mrb[0].mxu0
  %v526 = vadd.f32 0.0, %v525
  %v527 = vpop.f32.mrb[0].mxu0
  %v528 = vadd.f32 0.0, %v527
  %529 = vdwg.mxu0
  %530 = vmatprep.subr.mxu0 0.0
  %531 = vmatpush1.msra.mxu0 %v26
  %532 = vmatprep.subr.mxu0 0.0
  %533 = vmatpush1.msra.mxu0 %v29
  %534 = vmatprep.subr.mxu0 0.0
  %535 = vmatpush1.msra.mxu0 %v32
  %536 = vmatprep.subr.mxu0 0.0
  %537 = vmatpush1.msra.mxu0 %v35
  %538 = vmatprep.subr.mxu0 0.0
  %539 = vmatpush1.msra.mxu0 %v38
  %540 = vmatprep.subr.mxu0 0.0
  %541 = vmatpush1.msra.mxu0 %v41
  %542 = vmatprep.subr.mxu0 0.0
  %543 = vmatpush1.msra.mxu0 %v44
  %544 = vmatprep.subr.mxu0 0.0
  %545 = vmatpush1.msra.mxu0 %v47
  %546 = vmatprep.subr.mxu0 0.0
  %547 = vmatpush1.msra.mxu0 %v50
  %548 = vmatprep.subr.mxu0 0.0
  %549 = vmatpush1.msra.mxu0 %v53
  %550 = vmatprep.subr.mxu0 0.0
  %551 = vmatpush1.msra.mxu0 %v56
  %552 = vmatprep.subr.mxu0 0.0
  %553 = vmatpush1.msra.mxu0 %v59
  %554 = vmatprep.subr.mxu0 0.0
  %555 = vmatpush1.msra.mxu0 %v62
  %556 = vmatprep.subr.mxu0 0.0
  %557 = vmatpush1.msra.mxu0 %v65
  %558 = vmatprep.subr.mxu0 0.0
  %559 = vmatpush1.msra.mxu0 %v68
  %560 = vmatprep.subr.mxu0 0.0
  %561 = vmatpush1.msra.mxu0 %v71
  %562 = vmatprep.subr.mxu0 0.0
  %563 = vmatpush1.msra.mxu0 0.0
  %564 = vmatprep.subr.mxu0 0.0
  %565 = vmatpush1.msra.mxu0 0.0
  %566 = vmatprep.subr.mxu0 0.0
  %567 = vmatpush1.msra.mxu0 0.0
  %568 = vmatprep.subr.mxu0 0.0
  %569 = vmatpush1.msra.mxu0 0.0
  %570 = vmatprep.subr.mxu0 0.0
  %571 = vmatpush1.msra.mxu0 0.0
  %572 = vmatprep.subr.mxu0 0.0
  %573 = vmatpush1.msra.mxu0 0.0
  %574 = vmatprep.subr.mxu0 0.0
  %575 = vmatpush1.msra.mxu0 0.0
  %576 = vmatprep.subr.mxu0 0.0
  %577 = vmatpush1.msra.mxu0 0.0
  %578 = vmatprep.subr.mxu0 0.0
  %579 = vmatpush1.msra.mxu0 0.0
  %580 = vmatprep.subr.mxu0 0.0
  %581 = vmatpush1.msra.mxu0 0.0
  %582 = vmatprep.subr.mxu0 0.0
  %583 = vmatpush1.msra.mxu0 0.0
  %584 = vmatprep.subr.mxu0 0.0
  %585 = vmatpush1.msra.mxu0 0.0
  %586 = vmatprep.subr.mxu0 0.0
  %587 = vmatpush1.msra.mxu0 0.0
  %588 = vmatprep.subr.mxu0 0.0
  %589 = vmatpush1.msra.mxu0 0.0
  %590 = vmatprep.subr.mxu0 0.0
  %591 = vmatpush1.msra.mxu0 0.0
  %592 = vmatprep.subr.mxu0 0.0
  %593 = vmatpush1.msra.mxu0 0.0
  %594 = vmatprep.mubr.f32.mxu0 0.0
  %595 = vmatmul.mubr.f32.gmra.mrb[0].mxu0 %v452
  %v596 = vpop.f32.mrb[0].mxu0
  %v597 = vadd.f32 0.0, %v596
  %v598 = vpop.f32.mrb[0].mxu0
  %599 = vdwg.mxu0
  %v600 = vadd.f32 %v456, %v526
  %v601 = vxor.u32 %v600, 2147483648
  %v602 = vmul.f32 %v601, 1.442695
  %v603 = vpow.pop %v602
  %v604 = vadd.f32 %v603, 1.0
  %v605 = vrcp.pop %v604
  %v606 = vmul.f32 1.0, %v605
  %v607 = vadd.f32 %v457, %v528
  %v608 = vxor.u32 %v607, 2147483648
  %v609 = vmul.f32 %v608, 1.442695
  %v610 = vpow.pop %v609
  %v611 = vadd.f32 %v610, 1.0
  %v612 = vrcp.pop %v611
  %v613 = vmul.f32 1.0, %v612
  %v614 = vadd.f32 %v597, %v78
  %v615 = vmul.f32 %v606, %v614
  %v616 = vadd.f32 %v458, %v615
  %v617 = vtanh.pop %v616
  %v618 = vsub.f32 1.0, %v613
  %v619 = vmul.f32 %v618, %v617
  %v620 = vmul.f32 %v613, %v452
  %v621 = vadd.f32 %v619, %v620
  %s622 = sadd.s32 %s80, 2
  %v623 = vstv %s622
  %vm624 = vcmp.lt.s32.totalorder %v623, %v72
  %v625 = vsel %vm624, 1, 0
  %v626 = vcvt.s32.f32 %v625
  %628 = vset.pattern.permute.xlu0 0
  %629 = vperm.xlu0 %628, %v626
  %v630 = vpop.permute.xlu0 %629
  %v632 = vmul.f32 %v630, %v621
  %v633 = vsub.f32 1.0, %v626
  %635 = vset.pattern.permute.xlu0 0
  %636 = vperm.xlu0 %635, %v633
  %v637 = vpop.permute.xlu0 %636
  %v639 = vmul.f32 %v637, %v452
  %v640 = vadd.f32 %v632, %v639
  %s641 = scalar_lea.vmem %s4, 16
  %642 = vst [vmem:[%s641] sm:$0xff] %v632
  %s643 = scalar_lea.vmem %s0, 72
  %v644 = vld [vmem:[%s643] sm:$0xff]
  %v645 = vld [vmem:[%s643 + $0x8] sm:$0xff]
  %v646 = vld [vmem:[%s643 + $0x10] sm:$0xff]
  %647 = vmatprep.subr.mxu0 %v25
  %648 = vmatpush1.msra.mxu0 %v24
  %649 = vmatprep.subr.mxu0 %v28
  %650 = vmatpush1.msra.mxu0 %v27
  %651 = vmatprep.subr.mxu0 %v31
  %652 = vmatpush1.msra.mxu0 %v30
  %653 = vmatprep.subr.mxu0 %v34
  %654 = vmatpush1.msra.mxu0 %v33
  %655 = vmatprep.subr.mxu0 %v37
  %656 = vmatpush1.msra.mxu0 %v36
  %657 = vmatprep.subr.mxu0 %v40
  %658 = vmatpush1.msra.mxu0 %v39
  %659 = vmatprep.subr.mxu0 %v43
  %660 = vmatpush1.msra.mxu0 %v42
  %661 = vmatprep.subr.mxu0 %v46
  %662 = vmatpush1.msra.mxu0 %v45
  %663 = vmatprep.subr.mxu0 %v49
  %664 = vmatpush1.msra.mxu0 %v48
  %665 = vmatprep.subr.mxu0 %v52
  %666 = vmatpush1.msra.mxu0 %v51
  %667 = vmatprep.subr.mxu0 %v55
  %668 = vmatpush1.msra.mxu0 %v54
  %669 = vmatprep.subr.mxu0 %v58
  %670 = vmatpush1.msra.mxu0 %v57
  %671 = vmatprep.subr.mxu0 %v61
  %672 = vmatpush1.msra.mxu0 %v60
  %673 = vmatprep.subr.mxu0 %v64
  %674 = vmatpush1.msra.mxu0 %v63
  %675 = vmatprep.subr.mxu0 %v67
  %676 = vmatpush1.msra.mxu0 %v66
  %677 = vmatprep.subr.mxu0 %v70
  %678 = vmatpush1.msra.mxu0 %v69
  %679 = vmatprep.subr.mxu0 0.0
  %680 = vmatpush1.msra.mxu0 0.0
  %681 = vmatprep.subr.mxu0 0.0
  %682 = vmatpush1.msra.mxu0 0.0
  %683 = vmatprep.subr.mxu0 0.0
  %684 = vmatpush1.msra.mxu0 0.0
  %685 = vmatprep.subr.mxu0 0.0
  %686 = vmatpush1.msra.mxu0 0.0
  %687 = vmatprep.subr.mxu0 0.0
  %688 = vmatpush1.msra.mxu0 0.0
  %689 = vmatprep.subr.mxu0 0.0
  %690 = vmatpush1.msra.mxu0 0.0
  %691 = vmatprep.subr.mxu0 0.0
  %692 = vmatpush1.msra.mxu0 0.0
  %693 = vmatprep.subr.mxu0 0.0
  %694 = vmatpush1.msra.mxu0 0.0
  %695 = vmatprep.subr.mxu0 0.0
  %696 = vmatpush1.msra.mxu0 0.0
  %697 = vmatprep.subr.mxu0 0.0
  %698 = vmatpush1.msra.mxu0 0.0
  %699 = vmatprep.subr.mxu0 0.0
  %700 = vmatpush1.msra.mxu0 0.0
  %701 = vmatprep.subr.mxu0 0.0
  %702 = vmatpush1.msra.mxu0 0.0
  %703 = vmatprep.subr.mxu0 0.0
  %704 = vmatpush1.msra.mxu0 0.0
  %705 = vmatprep.subr.mxu0 0.0
  %706 = vmatpush1.msra.mxu0 0.0
  %707 = vmatprep.subr.mxu0 0.0
  %708 = vmatpush1.msra.mxu0 0.0
  %709 = vmatprep.subr.mxu0 0.0
  %710 = vmatpush1.msra.mxu0 0.0
  %711 = vmatprep.mubr.f32.mxu0 0.0
  %712 = vmatmul.mubr.f32.gmra.mrb[0].mxu0 %v640
  %v713 = vpop.f32.mrb[0].mxu0
  %v714 = vadd.f32 0.0, %v713
  %v715 = vpop.f32.mrb[0].mxu0
  %v716 = vadd.f32 0.0, %v715
  %717 = vdwg.mxu0
  %718 = vmatprep.subr.mxu0 0.0
  %719 = vmatpush1.msra.mxu0 %v26
  %720 = vmatprep.subr.mxu0 0.0
  %721 = vmatpush1.msra.mxu0 %v29
  %722 = vmatprep.subr.mxu0 0.0
  %723 = vmatpush1.msra.mxu0 %v32
  %724 = vmatprep.subr.mxu0 0.0
  %725 = vmatpush1.msra.mxu0 %v35
  %726 = vmatprep.subr.mxu0 0.0
  %727 = vmatpush1.msra.mxu0 %v38
  %728 = vmatprep.subr.mxu0 0.0
  %729 = vmatpush1.msra.mxu0 %v41
  %730 = vmatprep.subr.mxu0 0.0
  %731 = vmatpush1.msra.mxu0 %v44
  %732 = vmatprep.subr.mxu0 0.0
  %733 = vmatpush1.msra.mxu0 %v47
  %734 = vmatprep.subr.mxu0 0.0
  %735 = vmatpush1.msra.mxu0 %v50
  %736 = vmatprep.subr.mxu0 0.0
  %737 = vmatpush1.msra.mxu0 %v53
  %738 = vmatprep.subr.mxu0 0.0
  %739 = vmatpush1.msra.mxu0 %v56
  %740 = vmatprep.subr.mxu0 0.0
  %741 = vmatpush1.msra.mxu0 %v59
  %742 = vmatprep.subr.mxu0 0.0
  %743 = vmatpush1.msra.mxu0 %v62
  %744 = vmatprep.subr.mxu0 0.0
  %745 = vmatpush1.msra.mxu0 %v65
  %746 = vmatprep.subr.mxu0 0.0
  %747 = vmatpush1.msra.mxu0 %v68
  %748 = vmatprep.subr.mxu0 0.0
  %749 = vmatpush1.msra.mxu0 %v71
  %750 = vmatprep.subr.mxu0 0.0
  %751 = vmatpush1.msra.mxu0 0.0
  %752 = vmatprep.subr.mxu0 0.0
  %753 = vmatpush1.msra.mxu0 0.0
  %754 = vmatprep.subr.mxu0 0.0
  %755 = vmatpush1.msra.mxu0 0.0
  %756 = vmatprep.subr.mxu0 0.0
  %757 = vmatpush1.msra.mxu0 0.0
  %758 = vmatprep.subr.mxu0 0.0
  %759 = vmatpush1.msra.mxu0 0.0
  %760 = vmatprep.subr.mxu0 0.0
  %761 = vmatpush1.msra.mxu0 0.0
  %762 = vmatprep.subr.mxu0 0.0
  %763 = vmatpush1.msra.mxu0 0.0
  %764 = vmatprep.subr.mxu0 0.0
  %765 = vmatpush1.msra.mxu0 0.0
  %766 = vmatprep.subr.mxu0 0.0
  %767 = vmatpush1.msra.mxu0 0.0
  %768 = vmatprep.subr.mxu0 0.0
  %769 = vmatpush1.msra.mxu0 0.0
  %770 = vmatprep.subr.mxu0 0.0
  %771 = vmatpush1.msra.mxu0 0.0
  %772 = vmatprep.subr.mxu0 0.0
  %773 = vmatpush1.msra.mxu0 0.0
  %774 = vmatprep.subr.mxu0 0.0
  %775 = vmatpush1.msra.mxu0 0.0
  %776 = vmatprep.subr.mxu0 0.0
  %777 = vmatpush1.msra.mxu0 0.0
  %778 = vmatprep.subr.mxu0 0.0
  %779 = vmatpush1.msra.mxu0 0.0
  %780 = vmatprep.subr.mxu0 0.0
  %781 = vmatpush1.msra.mxu0 0.0
  %782 = vmatprep.mubr.f32.mxu0 0.0
  %783 = vmatmul.mubr.f32.gmra.mrb[0].mxu0 %v640
  %v784 = vpop.f32.mrb[0].mxu0
  %v785 = vadd.f32 0.0, %v784
  %v786 = vpop.f32.mrb[0].mxu0
  %787 = vdwg.mxu0
  %v788 = vadd.f32 %v644, %v714
  %v789 = vxor.u32 %v788, 2147483648
  %v790 = vmul.f32 %v789, 1.442695
  %v791 = vpow.pop %v790
  %v792 = vadd.f32 %v791, 1.0
  %v793 = vrcp.pop %v792
  %v794 = vmul.f32 1.0, %v793
  %v795 = vadd.f32 %v645, %v716
  %v796 = vxor.u32 %v795, 2147483648
  %v797 = vmul.f32 %v796, 1.442695
  %v798 = vpow.pop %v797
  %v799 = vadd.f32 %v798, 1.0
  %v800 = vrcp.pop %v799
  %v801 = vmul.f32 1.0, %v800
  %v802 = vadd.f32 %v785, %v78
  %v803 = vmul.f32 %v794, %v802
  %v804 = vadd.f32 %v646, %v803
  %v805 = vtanh.pop %v804
  %v806 = vsub.f32 1.0, %v801
  %v807 = vmul.f32 %v806, %v805
  %v808 = vmul.f32 %v801, %v640
  %v809 = vadd.f32 %v807, %v808
  %s810 = sadd.s32 %s80, 3
  %v811 = vstv %s810
  %vm812 = vcmp.lt.s32.totalorder %v811, %v72
  %v813 = vsel %vm812, 1, 0
  %v814 = vcvt.s32.f32 %v813
  %816 = vset.pattern.permute.xlu0 0
  %817 = vperm.xlu0 %816, %v814
  %v818 = vpop.permute.xlu0 %817
  %v820 = vmul.f32 %v818, %v809
  %v821 = vsub.f32 1.0, %v814
  %823 = vset.pattern.permute.xlu0 0
  %824 = vperm.xlu0 %823, %v821
  %v825 = vpop.permute.xlu0 %824
  %v827 = vmul.f32 %v825, %v640
  %v828 = vadd.f32 %v820, %v827
  %s829 = scalar_lea.vmem %s4, 24
  %830 = vst [vmem:[%s829] sm:$0xff] %v820
  %s831 = scalar_lea.vmem %s0, 96
  %v832 = vld [vmem:[%s831] sm:$0xff]
  %v833 = vld [vmem:[%s831 + $0x8] sm:$0xff]
  %v834 = vld [vmem:[%s831 + $0x10] sm:$0xff]
  %835 = vmatprep.subr.mxu0 %v25
  %836 = vmatpush1.msra.mxu0 %v24
  %837 = vmatprep.subr.mxu0 %v28
  %838 = vmatpush1.msra.mxu0 %v27
  %839 = vmatprep.subr.mxu0 %v31
  %840 = vmatpush1.msra.mxu0 %v30
  %841 = vmatprep.subr.mxu0 %v34
  %842 = vmatpush1.msra.mxu0 %v33
  %843 = vmatprep.subr.mxu0 %v37
  %844 = vmatpush1.msra.mxu0 %v36
  %845 = vmatprep.subr.mxu0 %v40
  %846 = vmatpush1.msra.mxu0 %v39
  %847 = vmatprep.subr.mxu0 %v43
  %848 = vmatpush1.msra.mxu0 %v42
  %849 = vmatprep.subr.mxu0 %v46
  %850 = vmatpush1.msra.mxu0 %v45
  %851 = vmatprep.subr.mxu0 %v49
  %852 = vmatpush1.msra.mxu0 %v48
  %853 = vmatprep.subr.mxu0 %v52
  %854 = vmatpush1.msra.mxu0 %v51
  %855 = vmatprep.subr.mxu0 %v55
  %856 = vmatpush1.msra.mxu0 %v54
  %857 = vmatprep.subr.mxu0 %v58
  %858 = vmatpush1.msra.mxu0 %v57
  %859 = vmatprep.subr.mxu0 %v61
  %860 = vmatpush1.msra.mxu0 %v60
  %861 = vmatprep.subr.mxu0 %v64
  %862 = vmatpush1.msra.mxu0 %v63
  %863 = vmatprep.subr.mxu0 %v67
  %864 = vmatpush1.msra.mxu0 %v66
  %865 = vmatprep.subr.mxu0 %v70
  %866 = vmatpush1.msra.mxu0 %v69
  %867 = vmatprep.subr.mxu0 0.0
  %868 = vmatpush1.msra.mxu0 0.0
  %869 = vmatprep.subr.mxu0 0.0
  %870 = vmatpush1.msra.mxu0 0.0
  %871 = vmatprep.subr.mxu0 0.0
  %872 = vmatpush1.msra.mxu0 0.0
  %873 = vmatprep.subr.mxu0 0.0
  %874 = vmatpush1.msra.mxu0 0.0
  %875 = vmatprep.subr.mxu0 0.0
  %876 = vmatpush1.msra.mxu0 0.0
  %877 = vmatprep.subr.mxu0 0.0
  %878 = vmatpush1.msra.mxu0 0.0
  %879 = vmatprep.subr.mxu0 0.0
  %880 = vmatpush1.msra.mxu0 0.0
  %881 = vmatprep.subr.mxu0 0.0
  %882 = vmatpush1.msra.mxu0 0.0
  %883 = vmatprep.subr.mxu0 0.0
  %884 = vmatpush1.msra.mxu0 0.0
  %885 = vmatprep.subr.mxu0 0.0
  %886 = vmatpush1.msra.mxu0 0.0
  %887 = vmatprep.subr.mxu0 0.0
  %888 = vmatpush1.msra.mxu0 0.0
  %889 = vmatprep.subr.mxu0 0.0
  %890 = vmatpush1.msra.mxu0 0.0
  %891 = vmatprep.subr.mxu0 0.0
  %892 = vmatpush1.msra.mxu0 0.0
  %893 = vmatprep.subr.mxu0 0.0
  %894 = vmatpush1.msra.mxu0 0.0
  %895 = vmatprep.subr.mxu0 0.0
  %896 = vmatpush1.msra.mxu0 0.0
  %897 = vmatprep.subr.mxu0 0.0
  %898 = vmatpush1.msra.mxu0 0.0
  %899 = vmatprep.mubr.f32.mxu0 0.0
  %900 = vmatmul.mubr.f32.gmra.mrb[0].mxu0 %v828
  %v901 = vpop.f32.mrb[0].mxu0
  %v902 = vadd.f32 0.0, %v901
  %v903 = vpop.f32.mrb[0].mxu0
  %v904 = vadd.f32 0.0, %v903
  %905 = vdwg.mxu0
  %906 = vmatprep.subr.mxu0 0.0
  %907 = vmatpush1.msra.mxu0 %v26
  %908 = vmatprep.subr.mxu0 0.0
  %909 = vmatpush1.msra.mxu0 %v29
  %910 = vmatprep.subr.mxu0 0.0
  %911 = vmatpush1.msra.mxu0 %v32
  %912 = vmatprep.subr.mxu0 0.0
  %913 = vmatpush1.msra.mxu0 %v35
  %914 = vmatprep.subr.mxu0 0.0
  %915 = vmatpush1.msra.mxu0 %v38
  %916 = vmatprep.subr.mxu0 0.0
  %917 = vmatpush1.msra.mxu0 %v41
  %918 = vmatprep.subr.mxu0 0.0
  %919 = vmatpush1.msra.mxu0 %v44
  %920 = vmatprep.subr.mxu0 0.0
  %921 = vmatpush1.msra.mxu0 %v47
  %922 = vmatprep.subr.mxu0 0.0
  %923 = vmatpush1.msra.mxu0 %v50
  %924 = vmatprep.subr.mxu0 0.0
  %925 = vmatpush1.msra.mxu0 %v53
  %926 = vmatprep.subr.mxu0 0.0
  %927 = vmatpush1.msra.mxu0 %v56
  %928 = vmatprep.subr.mxu0 0.0
  %929 = vmatpush1.msra.mxu0 %v59
  %930 = vmatprep.subr.mxu0 0.0
  %931 = vmatpush1.msra.mxu0 %v62
  %932 = vmatprep.subr.mxu0 0.0
  %933 = vmatpush1.msra.mxu0 %v65
  %934 = vmatprep.subr.mxu0 0.0
  %935 = vmatpush1.msra.mxu0 %v68
  %936 = vmatprep.subr.mxu0 0.0
  %937 = vmatpush1.msra.mxu0 %v71
  %938 = vmatprep.subr.mxu0 0.0
  %939 = vmatpush1.msra.mxu0 0.0
  %940 = vmatprep.subr.mxu0 0.0
  %941 = vmatpush1.msra.mxu0 0.0
  %942 = vmatprep.subr.mxu0 0.0
  %943 = vmatpush1.msra.mxu0 0.0
  %944 = vmatprep.subr.mxu0 0.0
  %945 = vmatpush1.msra.mxu0 0.0
  %946 = vmatprep.subr.mxu0 0.0
  %947 = vmatpush1.msra.mxu0 0.0
  %948 = vmatprep.subr.mxu0 0.0
  %949 = vmatpush1.msra.mxu0 0.0
  %950 = vmatprep.subr.mxu0 0.0
  %951 = vmatpush1.msra.mxu0 0.0
  %952 = vmatprep.subr.mxu0 0.0
  %953 = vmatpush1.msra.mxu0 0.0
  %954 = vmatprep.subr.mxu0 0.0
  %955 = vmatpush1.msra.mxu0 0.0
  %956 = vmatprep.subr.mxu0 0.0
  %957 = vmatpush1.msra.mxu0 0.0
  %958 = vmatprep.subr.mxu0 0.0
  %959 = vmatpush1.msra.mxu0 0.0
  %960 = vmatprep.subr.mxu0 0.0
  %961 = vmatpush1.msra.mxu0 0.0
  %962 = vmatprep.subr.mxu0 0.0
  %963 = vmatpush1.msra.mxu0 0.0
  %964 = vmatprep.subr.mxu0 0.0
  %965 = vmatpush1.msra.mxu0 0.0
  %966 = vmatprep.subr.mxu0 0.0
  %967 = vmatpush1.msra.mxu0 0.0
  %968 = vmatprep.subr.mxu0 0.0
  %969 = vmatpush1.msra.mxu0 0.0
  %970 = vmatprep.mubr.f32.mxu0 0.0
  %971 = vmatmul.mubr.f32.gmra.mrb[0].mxu0 %v828
  %v972 = vpop.f32.mrb[0].mxu0
  %v973 = vadd.f32 0.0, %v972
  %v974 = vpop.f32.mrb[0].mxu0
  %975 = vdwg.mxu0
  %v976 = vadd.f32 %v832, %v902
  %v977 = vxor.u32 %v976, 2147483648
  %v978 = vmul.f32 %v977, 1.442695
  %v979 = vpow.pop %v978
  %v980 = vadd.f32 %v979, 1.0
  %v981 = vrcp.pop %v980
  %v982 = vmul.f32 1.0, %v981
  %v983 = vadd.f32 %v833, %v904
  %v984 = vxor.u32 %v983, 2147483648
  %v985 = vmul.f32 %v984, 1.442695
  %v986 = vpow.pop %v985
  %v987 = vadd.f32 %v986, 1.0
  %v988 = vrcp.pop %v987
  %v989 = vmul.f32 1.0, %v988
  %v990 = vadd.f32 %v973, %v78
  %v991 = vmul.f32 %v982, %v990
  %v992 = vadd.f32 %v834, %v991
  %v993 = vtanh.pop %v992
  %v994 = vsub.f32 1.0, %v989
  %v995 = vmul.f32 %v994, %v993
  %v996 = vmul.f32 %v989, %v828
  %v997 = vadd.f32 %v995, %v996
  %s998 = sadd.s32 %s80, 4
  %v999 = vstv %s998
  %vm1000 = vcmp.lt.s32.totalorder %v999, %v72
  %v1001 = vsel %vm1000, 1, 0
  %v1002 = vcvt.s32.f32 %v1001
  %1004 = vset.pattern.permute.xlu0 0
  %1005 = vperm.xlu0 %1004, %v1002
  %v1006 = vpop.permute.xlu0 %1005
  %v1008 = vmul.f32 %v1006, %v997
  %v1009 = vsub.f32 1.0, %v1002
  %1011 = vset.pattern.permute.xlu0 0
  %1012 = vperm.xlu0 %1011, %v1009
  %v1013 = vpop.permute.xlu0 %1012
  %v1015 = vmul.f32 %v1013, %v828
  %v1016 = vadd.f32 %v1008, %v1015
  %s1017 = scalar_lea.vmem %s4, 32
  %1018 = vst [vmem:[%s1017] sm:$0xff] %v1008
  %s1019 = scalar_lea.vmem %s0, 120
  %v1020 = vld [vmem:[%s1019] sm:$0xff]
  %v1021 = vld [vmem:[%s1019 + $0x8] sm:$0xff]
  %v1022 = vld [vmem:[%s1019 + $0x10] sm:$0xff]
  %1023 = vmatprep.subr.mxu0 %v25
  %1024 = vmatpush1.msra.mxu0 %v24
  %1025 = vmatprep.subr.mxu0 %v28
  %1026 = vmatpush1.msra.mxu0 %v27
  %1027 = vmatprep.subr.mxu0 %v31
  %1028 = vmatpush1.msra.mxu0 %v30
  %1029 = vmatprep.subr.mxu0 %v34
  %1030 = vmatpush1.msra.mxu0 %v33
  %1031 = vmatprep.subr.mxu0 %v37
  %1032 = vmatpush1.msra.mxu0 %v36
  %1033 = vmatprep.subr.mxu0 %v40
  %1034 = vmatpush1.msra.mxu0 %v39
  %1035 = vmatprep.subr.mxu0 %v43
  %1036 = vmatpush1.msra.mxu0 %v42
  %1037 = vmatprep.subr.mxu0 %v46
  %1038 = vmatpush1.msra.mxu0 %v45
  %1039 = vmatprep.subr.mxu0 %v49
  %1040 = vmatpush1.msra.mxu0 %v48
  %1041 = vmatprep.subr.mxu0 %v52
  %1042 = vmatpush1.msra.mxu0 %v51
  %1043 = vmatprep.subr.mxu0 %v55
  %1044 = vmatpush1.msra.mxu0 %v54
  %1045 = vmatprep.subr.mxu0 %v58
  %1046 = vmatpush1.msra.mxu0 %v57
  %1047 = vmatprep.subr.mxu0 %v61
  %1048 = vmatpush1.msra.mxu0 %v60
  %1049 = vmatprep.subr.mxu0 %v64
  %1050 = vmatpush1.msra.mxu0 %v63
  %1051 = vmatprep.subr.mxu0 %v67
  %1052 = vmatpush1.msra.mxu0 %v66
  %1053 = vmatprep.subr.mxu0 %v70
  %1054 = vmatpush1.msra.mxu0 %v69
  %1055 = vmatprep.subr.mxu0 0.0
  %1056 = vmatpush1.msra.mxu0 0.0
  %1057 = vmatprep.subr.mxu0 0.0
  %1058 = vmatpush1.msra.mxu0 0.0
  %1059 = vmatprep.subr.mxu0 0.0
  %1060 = vmatpush1.msra.mxu0 0.0
  %1061 = vmatprep.subr.mxu0 0.0
  %1062 = vmatpush1.msra.mxu0 0.0
  %1063 = vmatprep.subr.mxu0 0.0
  %1064 = vmatpush1.msra.mxu0 0.0
  %1065 = vmatprep.subr.mxu0 0.0
  %1066 = vmatpush1.msra.mxu0 0.0
  %1067 = vmatprep.subr.mxu0 0.0
  %1068 = vmatpush1.msra.mxu0 0.0
  %1069 = vmatprep.subr.mxu0 0.0
  %1070 = vmatpush1.msra.mxu0 0.0
  %1071 = vmatprep.subr.mxu0 0.0
  %1072 = vmatpush1.msra.mxu0 0.0
  %1073 = vmatprep.subr.mxu0 0.0
  %1074 = vmatpush1.msra.mxu0 0.0
  %1075 = vmatprep.subr.mxu0 0.0
  %1076 = vmatpush1.msra.mxu0 0.0
  %1077 = vmatprep.subr.mxu0 0.0
  %1078 = vmatpush1.msra.mxu0 0.0
  %1079 = vmatprep.subr.mxu0 0.0
  %1080 = vmatpush1.msra.mxu0 0.0
  %1081 = vmatprep.subr.mxu0 0.0
  %1082 = vmatpush1.msra.mxu0 0.0
  %1083 = vmatprep.subr.mxu0 0.0
  %1084 = vmatpush1.msra.mxu0 0.0
  %1085 = vmatprep.subr.mxu0 0.0
  %1086 = vmatpush1.msra.mxu0 0.0
  %1087 = vmatprep.mubr.f32.mxu0 0.0
  %1088 = vmatmul.mubr.f32.gmra.mrb[0].mxu0 %v1016
  %v1089 = vpop.f32.mrb[0].mxu0
  %v1090 = vadd.f32 0.0, %v1089
  %v1091 = vpop.f32.mrb[0].mxu0
  %v1092 = vadd.f32 0.0, %v1091
  %1093 = vdwg.mxu0
  %1094 = vmatprep.subr.mxu0 0.0
  %1095 = vmatpush1.msra.mxu0 %v26
  %1096 = vmatprep.subr.mxu0 0.0
  %1097 = vmatpush1.msra.mxu0 %v29
  %1098 = vmatprep.subr.mxu0 0.0
  %1099 = vmatpush1.msra.mxu0 %v32
  %1100 = vmatprep.subr.mxu0 0.0
  %1101 = vmatpush1.msra.mxu0 %v35
  %1102 = vmatprep.subr.mxu0 0.0
  %1103 = vmatpush1.msra.mxu0 %v38
  %1104 = vmatprep.subr.mxu0 0.0
  %1105 = vmatpush1.msra.mxu0 %v41
  %1106 = vmatprep.subr.mxu0 0.0
  %1107 = vmatpush1.msra.mxu0 %v44
  %1108 = vmatprep.subr.mxu0 0.0
  %1109 = vmatpush1.msra.mxu0 %v47
  %1110 = vmatprep.subr.mxu0 0.0
  %1111 = vmatpush1.msra.mxu0 %v50
  %1112 = vmatprep.subr.mxu0 0.0
  %1113 = vmatpush1.msra.mxu0 %v53
  %1114 = vmatprep.subr.mxu0 0.0
  %1115 = vmatpush1.msra.mxu0 %v56
  %1116 = vmatprep.subr.mxu0 0.0
  %1117 = vmatpush1.msra.mxu0 %v59
  %1118 = vmatprep.subr.mxu0 0.0
  %1119 = vmatpush1.msra.mxu0 %v62
  %1120 = vmatprep.subr.mxu0 0.0
  %1121 = vmatpush1.msra.mxu0 %v65
  %1122 = vmatprep.subr.mxu0 0.0
  %1123 = vmatpush1.msra.mxu0 %v68
  %1124 = vmatprep.subr.mxu0 0.0
  %1125 = vmatpush1.msra.mxu0 %v71
  %1126 = vmatprep.subr.mxu0 0.0
  %1127 = vmatpush1.msra.mxu0 0.0
  %1128 = vmatprep.subr.mxu0 0.0
  %1129 = vmatpush1.msra.mxu0 0.0
  %1130 = vmatprep.subr.mxu0 0.0
  %1131 = vmatpush1.msra.mxu0 0.0
  %1132 = vmatprep.subr.mxu0 0.0
  %1133 = vmatpush1.msra.mxu0 0.0
  %1134 = vmatprep.subr.mxu0 0.0
  %1135 = vmatpush1.msra.mxu0 0.0
  %1136 = vmatprep.subr.mxu0 0.0
  %1137 = vmatpush1.msra.mxu0 0.0
  %1138 = vmatprep.subr.mxu0 0.0
  %1139 = vmatpush1.msra.mxu0 0.0
  %1140 = vmatprep.subr.mxu0 0.0
  %1141 = vmatpush1.msra.mxu0 0.0
  %1142 = vmatprep.subr.mxu0 0.0
  %1143 = vmatpush1.msra.mxu0 0.0
  %1144 = vmatprep.subr.mxu0 0.0
  %1145 = vmatpush1.msra.mxu0 0.0
  %1146 = vmatprep.subr.mxu0 0.0
  %1147 = vmatpush1.msra.mxu0 0.0
  %1148 = vmatprep.subr.mxu0 0.0
  %1149 = vmatpush1.msra.mxu0 0.0
  %1150 = vmatprep.subr.mxu0 0.0
  %1151 = vmatpush1.msra.mxu0 0.0
  %1152 = vmatprep.subr.mxu0 0.0
  %1153 = vmatpush1.msra.mxu0 0.0
  %1154 = vmatprep.subr.mxu0 0.0
  %1155 = vmatpush1.msra.mxu0 0.0
  %1156 = vmatprep.subr.mxu0 0.0
  %1157 = vmatpush1.msra.mxu0 0.0
  %1158 = vmatprep.mubr.f32.mxu0 0.0
  %1159 = vmatmul.mubr.f32.gmra.mrb[0].mxu0 %v1016
  %v1160 = vpop.f32.mrb[0].mxu0
  %v1161 = vadd.f32 0.0, %v1160
  %v1162 = vpop.f32.mrb[0].mxu0
  %1163 = vdwg.mxu0
  %v1164 = vadd.f32 %v1020, %v1090
  %v1165 = vxor.u32 %v1164, 2147483648
  %v1166 = vmul.f32 %v1165, 1.442695
  %v1167 = vpow.pop %v1166
  %v1168 = vadd.f32 %v1167, 1.0
  %v1169 = vrcp.pop %v1168
  %v1170 = vmul.f32 1.0, %v1169
  %v1171 = vadd.f32 %v1021, %v1092
  %v1172 = vxor.u32 %v1171, 2147483648
  %v1173 = vmul.f32 %v1172, 1.442695
  %v1174 = vpow.pop %v1173
  %v1175 = vadd.f32 %v1174, 1.0
  %v1176 = vrcp.pop %v1175
  %v1177 = vmul.f32 1.0, %v1176
  %v1178 = vadd.f32 %v1161, %v78
  %v1179 = vmul.f32 %v1170, %v1178
  %v1180 = vadd.f32 %v1022, %v1179
  %v1181 = vtanh.pop %v1180
  %v1182 = vsub.f32 1.0, %v1177
  %v1183 = vmul.f32 %v1182, %v1181
  %v1184 = vmul.f32 %v1177, %v1016
  %v1185 = vadd.f32 %v1183, %v1184
  %s1186 = sadd.s32 %s80, 5
  %v1187 = vstv %s1186
  %vm1188 = vcmp.lt.s32.totalorder %v1187, %v72
  %v1189 = vsel %vm1188, 1, 0
  %v1190 = vcvt.s32.f32 %v1189
  %1192 = vset.pattern.permute.xlu0 0
  %1193 = vperm.xlu0 %1192, %v1190
  %v1194 = vpop.permute.xlu0 %1193
  %v1196 = vmul.f32 %v1194, %v1185
  %v1197 = vsub.f32 1.0, %v1190
  %1199 = vset.pattern.permute.xlu0 0
  %1200 = vperm.xlu0 %1199, %v1197
  %v1201 = vpop.permute.xlu0 %1200
  %v1203 = vmul.f32 %v1201, %v1016
  %v1204 = vadd.f32 %v1196, %v1203
  %s1205 = scalar_lea.vmem %s4, 40
  %1206 = vst [vmem:[%s1205] sm:$0xff] %v1196
  %s1207 = scalar_lea.vmem %s0, 144
  %v1208 = vld [vmem:[%s1207] sm:$0xff]
  %v1209 = vld [vmem:[%s1207 + $0x8] sm:$0xff]
  %v1210 = vld [vmem:[%s1207 + $0x10] sm:$0xff]
  %1211 = vmatprep.subr.mxu0 %v25
  %1212 = vmatpush1.msra.mxu0 %v24
  %1213 = vmatprep.subr.mxu0 %v28
  %1214 = vmatpush1.msra.mxu0 %v27
  %1215 = vmatprep.subr.mxu0 %v31
  %1216 = vmatpush1.msra.mxu0 %v30
  %1217 = vmatprep.subr.mxu0 %v34
  %1218 = vmatpush1.msra.mxu0 %v33
  %1219 = vmatprep.subr.mxu0 %v37
  %1220 = vmatpush1.msra.mxu0 %v36
  %1221 = vmatprep.subr.mxu0 %v40
  %1222 = vmatpush1.msra.mxu0 %v39
  %1223 = vmatprep.subr.mxu0 %v43
  %1224 = vmatpush1.msra.mxu0 %v42
  %1225 = vmatprep.subr.mxu0 %v46
  %1226 = vmatpush1.msra.mxu0 %v45
  %1227 = vmatprep.subr.mxu0 %v49
  %1228 = vmatpush1.msra.mxu0 %v48
  %1229 = vmatprep.subr.mxu0 %v52
  %1230 = vmatpush1.msra.mxu0 %v51
  %1231 = vmatprep.subr.mxu0 %v55
  %1232 = vmatpush1.msra.mxu0 %v54
  %1233 = vmatprep.subr.mxu0 %v58
  %1234 = vmatpush1.msra.mxu0 %v57
  %1235 = vmatprep.subr.mxu0 %v61
  %1236 = vmatpush1.msra.mxu0 %v60
  %1237 = vmatprep.subr.mxu0 %v64
  %1238 = vmatpush1.msra.mxu0 %v63
  %1239 = vmatprep.subr.mxu0 %v67
  %1240 = vmatpush1.msra.mxu0 %v66
  %1241 = vmatprep.subr.mxu0 %v70
  %1242 = vmatpush1.msra.mxu0 %v69
  %1243 = vmatprep.subr.mxu0 0.0
  %1244 = vmatpush1.msra.mxu0 0.0
  %1245 = vmatprep.subr.mxu0 0.0
  %1246 = vmatpush1.msra.mxu0 0.0
  %1247 = vmatprep.subr.mxu0 0.0
  %1248 = vmatpush1.msra.mxu0 0.0
  %1249 = vmatprep.subr.mxu0 0.0
  %1250 = vmatpush1.msra.mxu0 0.0
  %1251 = vmatprep.subr.mxu0 0.0
  %1252 = vmatpush1.msra.mxu0 0.0
  %1253 = vmatprep.subr.mxu0 0.0
  %1254 = vmatpush1.msra.mxu0 0.0
  %1255 = vmatprep.subr.mxu0 0.0
  %1256 = vmatpush1.msra.mxu0 0.0
  %1257 = vmatprep.subr.mxu0 0.0
  %1258 = vmatpush1.msra.mxu0 0.0
  %1259 = vmatprep.subr.mxu0 0.0
  %1260 = vmatpush1.msra.mxu0 0.0
  %1261 = vmatprep.subr.mxu0 0.0
  %1262 = vmatpush1.msra.mxu0 0.0
  %1263 = vmatprep.subr.mxu0 0.0
  %1264 = vmatpush1.msra.mxu0 0.0
  %1265 = vmatprep.subr.mxu0 0.0
  %1266 = vmatpush1.msra.mxu0 0.0
  %1267 = vmatprep.subr.mxu0 0.0
  %1268 = vmatpush1.msra.mxu0 0.0
  %1269 = vmatprep.subr.mxu0 0.0
  %1270 = vmatpush1.msra.mxu0 0.0
  %1271 = vmatprep.subr.mxu0 0.0
  %1272 = vmatpush1.msra.mxu0 0.0
  %1273 = vmatprep.subr.mxu0 0.0
  %1274 = vmatpush1.msra.mxu0 0.0
  %1275 = vmatprep.mubr.f32.mxu0 0.0
  %1276 = vmatmul.mubr.f32.gmra.mrb[0].mxu0 %v1204
  %v1277 = vpop.f32.mrb[0].mxu0
  %v1278 = vadd.f32 0.0, %v1277
  %v1279 = vpop.f32.mrb[0].mxu0
  %v1280 = vadd.f32 0.0, %v1279
  %1281 = vdwg.mxu0
  %1282 = vmatprep.subr.mxu0 0.0
  %1283 = vmatpush1.msra.mxu0 %v26
  %1284 = vmatprep.subr.mxu0 0.0
  %1285 = vmatpush1.msra.mxu0 %v29
  %1286 = vmatprep.subr.mxu0 0.0
  %1287 = vmatpush1.msra.mxu0 %v32
  %1288 = vmatprep.subr.mxu0 0.0
  %1289 = vmatpush1.msra.mxu0 %v35
  %1290 = vmatprep.subr.mxu0 0.0
  %1291 = vmatpush1.msra.mxu0 %v38
  %1292 = vmatprep.subr.mxu0 0.0
  %1293 = vmatpush1.msra.mxu0 %v41
  %1294 = vmatprep.subr.mxu0 0.0
  %1295 = vmatpush1.msra.mxu0 %v44
  %1296 = vmatprep.subr.mxu0 0.0
  %1297 = vmatpush1.msra.mxu0 %v47
  %1298 = vmatprep.subr.mxu0 0.0
  %1299 = vmatpush1.msra.mxu0 %v50
  %1300 = vmatprep.subr.mxu0 0.0
  %1301 = vmatpush1.msra.mxu0 %v53
  %1302 = vmatprep.subr.mxu0 0.0
  %1303 = vmatpush1.msra.mxu0 %v56
  %1304 = vmatprep.subr.mxu0 0.0
  %1305 = vmatpush1.msra.mxu0 %v59
  %1306 = vmatprep.subr.mxu0 0.0
  %1307 = vmatpush1.msra.mxu0 %v62
  %1308 = vmatprep.subr.mxu0 0.0
  %1309 = vmatpush1.msra.mxu0 %v65
  %1310 = vmatprep.subr.mxu0 0.0
  %1311 = vmatpush1.msra.mxu0 %v68
  %1312 = vmatprep.subr.mxu0 0.0
  %1313 = vmatpush1.msra.mxu0 %v71
  %1314 = vmatprep.subr.mxu0 0.0
  %1315 = vmatpush1.msra.mxu0 0.0
  %1316 = vmatprep.subr.mxu0 0.0
  %1317 = vmatpush1.msra.mxu0 0.0
  %1318 = vmatprep.subr.mxu0 0.0
  %1319 = vmatpush1.msra.mxu0 0.0
  %1320 = vmatprep.subr.mxu0 0.0
  %1321 = vmatpush1.msra.mxu0 0.0
  %1322 = vmatprep.subr.mxu0 0.0
  %1323 = vmatpush1.msra.mxu0 0.0
  %1324 = vmatprep.subr.mxu0 0.0
  %1325 = vmatpush1.msra.mxu0 0.0
  %1326 = vmatprep.subr.mxu0 0.0
  %1327 = vmatpush1.msra.mxu0 0.0
  %1328 = vmatprep.subr.mxu0 0.0
  %1329 = vmatpush1.msra.mxu0 0.0
  %1330 = vmatprep.subr.mxu0 0.0
  %1331 = vmatpush1.msra.mxu0 0.0
  %1332 = vmatprep.subr.mxu0 0.0
  %1333 = vmatpush1.msra.mxu0 0.0
  %1334 = vmatprep.subr.mxu0 0.0
  %1335 = vmatpush1.msra.mxu0 0.0
  %1336 = vmatprep.subr.mxu0 0.0
  %1337 = vmatpush1.msra.mxu0 0.0
  %1338 = vmatprep.subr.mxu0 0.0
  %1339 = vmatpush1.msra.mxu0 0.0
  %1340 = vmatprep.subr.mxu0 0.0
  %1341 = vmatpush1.msra.mxu0 0.0
  %1342 = vmatprep.subr.mxu0 0.0
  %1343 = vmatpush1.msra.mxu0 0.0
  %1344 = vmatprep.subr.mxu0 0.0
  %1345 = vmatpush1.msra.mxu0 0.0
  %1346 = vmatprep.mubr.f32.mxu0 0.0
  %1347 = vmatmul.mubr.f32.gmra.mrb[0].mxu0 %v1204
  %v1348 = vpop.f32.mrb[0].mxu0
  %v1349 = vadd.f32 0.0, %v1348
  %v1350 = vpop.f32.mrb[0].mxu0
  %1351 = vdwg.mxu0
  %v1352 = vadd.f32 %v1208, %v1278
  %v1353 = vxor.u32 %v1352, 2147483648
  %v1354 = vmul.f32 %v1353, 1.442695
  %v1355 = vpow.pop %v1354
  %v1356 = vadd.f32 %v1355, 1.0
  %v1357 = vrcp.pop %v1356
  %v1358 = vmul.f32 1.0, %v1357
  %v1359 = vadd.f32 %v1209, %v1280
  %v1360 = vxor.u32 %v1359, 2147483648
  %v1361 = vmul.f32 %v1360, 1.442695
  %v1362 = vpow.pop %v1361
  %v1363 = vadd.f32 %v1362, 1.0
  %v1364 = vrcp.pop %v1363
  %v1365 = vmul.f32 1.0, %v1364
  %v1366 = vadd.f32 %v1349, %v78
  %v1367 = vmul.f32 %v1358, %v1366
  %v1368 = vadd.f32 %v1210, %v1367
  %v1369 = vtanh.pop %v1368
  %v1370 = vsub.f32 1.0, %v1365
  %v1371 = vmul.f32 %v1370, %v1369
  %v1372 = vmul.f32 %v1365, %v1204
  %v1373 = vadd.f32 %v1371, %v1372
  %s1374 = sadd.s32 %s80, 6
  %v1375 = vstv %s1374
  %vm1376 = vcmp.lt.s32.totalorder %v1375, %v72
  %v1377 = vsel %vm1376, 1, 0
  %v1378 = vcvt.s32.f32 %v1377
  %1380 = vset.pattern.permute.xlu0 0
  %1381 = vperm.xlu0 %1380, %v1378
  %v1382 = vpop.permute.xlu0 %1381
  %v1384 = vmul.f32 %v1382, %v1373
  %v1385 = vsub.f32 1.0, %v1378
  %1387 = vset.pattern.permute.xlu0 0
  %1388 = vperm.xlu0 %1387, %v1385
  %v1389 = vpop.permute.xlu0 %1388
  %v1391 = vmul.f32 %v1389, %v1204
  %v1392 = vadd.f32 %v1384, %v1391
  %s1393 = scalar_lea.vmem %s4, 48
  %1394 = vst [vmem:[%s1393] sm:$0xff] %v1384
  %s1395 = scalar_lea.vmem %s0, 168
  %v1396 = vld [vmem:[%s1395] sm:$0xff]
  %v1397 = vld [vmem:[%s1395 + $0x8] sm:$0xff]
  %v1398 = vld [vmem:[%s1395 + $0x10] sm:$0xff]
  %1399 = vmatprep.subr.mxu0 %v25
  %1400 = vmatpush1.msra.mxu0 %v24
  %1401 = vmatprep.subr.mxu0 %v28
  %1402 = vmatpush1.msra.mxu0 %v27
  %1403 = vmatprep.subr.mxu0 %v31
  %1404 = vmatpush1.msra.mxu0 %v30
  %1405 = vmatprep.subr.mxu0 %v34
  %1406 = vmatpush1.msra.mxu0 %v33
  %1407 = vmatprep.subr.mxu0 %v37
  %1408 = vmatpush1.msra.mxu0 %v36
  %1409 = vmatprep.subr.mxu0 %v40
  %1410 = vmatpush1.msra.mxu0 %v39
  %1411 = vmatprep.subr.mxu0 %v43
  %1412 = vmatpush1.msra.mxu0 %v42
  %1413 = vmatprep.subr.mxu0 %v46
  %1414 = vmatpush1.msra.mxu0 %v45
  %1415 = vmatprep.subr.mxu0 %v49
  %1416 = vmatpush1.msra.mxu0 %v48
  %1417 = vmatprep.subr.mxu0 %v52
  %1418 = vmatpush1.msra.mxu0 %v51
  %1419 = vmatprep.subr.mxu0 %v55
  %1420 = vmatpush1.msra.mxu0 %v54
  %1421 = vmatprep.subr.mxu0 %v58
  %1422 = vmatpush1.msra.mxu0 %v57
  %1423 = vmatprep.subr.mxu0 %v61
  %1424 = vmatpush1.msra.mxu0 %v60
  %1425 = vmatprep.subr.mxu0 %v64
  %1426 = vmatpush1.msra.mxu0 %v63
  %1427 = vmatprep.subr.mxu0 %v67
  %1428 = vmatpush1.msra.mxu0 %v66
  %1429 = vmatprep.subr.mxu0 %v70
  %1430 = vmatpush1.msra.mxu0 %v69
  %1431 = vmatprep.subr.mxu0 0.0
  %1432 = vmatpush1.msra.mxu0 0.0
  %1433 = vmatprep.subr.mxu0 0.0
  %1434 = vmatpush1.msra.mxu0 0.0
  %1435 = vmatprep.subr.mxu0 0.0
  %1436 = vmatpush1.msra.mxu0 0.0
  %1437 = vmatprep.subr.mxu0 0.0
  %1438 = vmatpush1.msra.mxu0 0.0
  %1439 = vmatprep.subr.mxu0 0.0
  %1440 = vmatpush1.msra.mxu0 0.0
  %1441 = vmatprep.subr.mxu0 0.0
  %1442 = vmatpush1.msra.mxu0 0.0
  %1443 = vmatprep.subr.mxu0 0.0
  %1444 = vmatpush1.msra.mxu0 0.0
  %1445 = vmatprep.subr.mxu0 0.0
  %1446 = vmatpush1.msra.mxu0 0.0
  %1447 = vmatprep.subr.mxu0 0.0
  %1448 = vmatpush1.msra.mxu0 0.0
  %1449 = vmatprep.subr.mxu0 0.0
  %1450 = vmatpush1.msra.mxu0 0.0
  %1451 = vmatprep.subr.mxu0 0.0
  %1452 = vmatpush1.msra.mxu0 0.0
  %1453 = vmatprep.subr.mxu0 0.0
  %1454 = vmatpush1.msra.mxu0 0.0
  %1455 = vmatprep.subr.mxu0 0.0
  %1456 = vmatpush1.msra.mxu0 0.0
  %1457 = vmatprep.subr.mxu0 0.0
  %1458 = vmatpush1.msra.mxu0 0.0
  %1459 = vmatprep.subr.mxu0 0.0
  %1460 = vmatpush1.msra.mxu0 0.0
  %1461 = vmatprep.subr.mxu0 0.0
  %1462 = vmatpush1.msra.mxu0 0.0
  %1463 = vmatprep.mubr.f32.mxu0 0.0
  %1464 = vmatmul.mubr.f32.gmra.mrb[0].mxu0 %v1392
  %v1465 = vpop.f32.mrb[0].mxu0
  %v1466 = vadd.f32 0.0, %v1465
  %v1467 = vpop.f32.mrb[0].mxu0
  %v1468 = vadd.f32 0.0, %v1467
  %1469 = vdwg.mxu0
  %1470 = vmatprep.subr.mxu0 0.0
  %1471 = vmatpush1.msra.mxu0 %v26
  %1472 = vmatprep.subr.mxu0 0.0
  %1473 = vmatpush1.msra.mxu0 %v29
  %1474 = vmatprep.subr.mxu0 0.0
  %1475 = vmatpush1.msra.mxu0 %v32
  %1476 = vmatprep.subr.mxu0 0.0
  %1477 = vmatpush1.msra.mxu0 %v35
  %1478 = vmatprep.subr.mxu0 0.0
  %1479 = vmatpush1.msra.mxu0 %v38
  %1480 = vmatprep.subr.mxu0 0.0
  %1481 = vmatpush1.msra.mxu0 %v41
  %1482 = vmatprep.subr.mxu0 0.0
  %1483 = vmatpush1.msra.mxu0 %v44
  %1484 = vmatprep.subr.mxu0 0.0
  %1485 = vmatpush1.msra.mxu0 %v47
  %1486 = vmatprep.subr.mxu0 0.0
  %1487 = vmatpush1.msra.mxu0 %v50
  %1488 = vmatprep.subr.mxu0 0.0
  %1489 = vmatpush1.msra.mxu0 %v53
  %1490 = vmatprep.subr.mxu0 0.0
  %1491 = vmatpush1.msra.mxu0 %v56
  %1492 = vmatprep.subr.mxu0 0.0
  %1493 = vmatpush1.msra.mxu0 %v59
  %1494 = vmatprep.subr.mxu0 0.0
  %1495 = vmatpush1.msra.mxu0 %v62
  %1496 = vmatprep.subr.mxu0 0.0
  %1497 = vmatpush1.msra.mxu0 %v65
  %1498 = vmatprep.subr.mxu0 0.0
  %1499 = vmatpush1.msra.mxu0 %v68
  %1500 = vmatprep.subr.mxu0 0.0
  %1501 = vmatpush1.msra.mxu0 %v71
  %1502 = vmatprep.subr.mxu0 0.0
  %1503 = vmatpush1.msra.mxu0 0.0
  %1504 = vmatprep.subr.mxu0 0.0
  %1505 = vmatpush1.msra.mxu0 0.0
  %1506 = vmatprep.subr.mxu0 0.0
  %1507 = vmatpush1.msra.mxu0 0.0
  %1508 = vmatprep.subr.mxu0 0.0
  %1509 = vmatpush1.msra.mxu0 0.0
  %1510 = vmatprep.subr.mxu0 0.0
  %1511 = vmatpush1.msra.mxu0 0.0
  %1512 = vmatprep.subr.mxu0 0.0
  %1513 = vmatpush1.msra.mxu0 0.0
  %1514 = vmatprep.subr.mxu0 0.0
  %1515 = vmatpush1.msra.mxu0 0.0
  %1516 = vmatprep.subr.mxu0 0.0
  %1517 = vmatpush1.msra.mxu0 0.0
  %1518 = vmatprep.subr.mxu0 0.0
  %1519 = vmatpush1.msra.mxu0 0.0
  %1520 = vmatprep.subr.mxu0 0.0
  %1521 = vmatpush1.msra.mxu0 0.0
  %1522 = vmatprep.subr.mxu0 0.0
  %1523 = vmatpush1.msra.mxu0 0.0
  %1524 = vmatprep.subr.mxu0 0.0
  %1525 = vmatpush1.msra.mxu0 0.0
  %1526 = vmatprep.subr.mxu0 0.0
  %1527 = vmatpush1.msra.mxu0 0.0
  %1528 = vmatprep.subr.mxu0 0.0
  %1529 = vmatpush1.msra.mxu0 0.0
  %1530 = vmatprep.subr.mxu0 0.0
  %1531 = vmatpush1.msra.mxu0 0.0
  %1532 = vmatprep.subr.mxu0 0.0
  %1533 = vmatpush1.msra.mxu0 0.0
  %1534 = vmatprep.mubr.f32.mxu0 0.0
  %1535 = vmatmul.mubr.f32.gmra.mrb[0].mxu0 %v1392
  %v1536 = vpop.f32.mrb[0].mxu0
  %v1537 = vadd.f32 0.0, %v1536
  %v1538 = vpop.f32.mrb[0].mxu0
  %1539 = vdwg.mxu0
  %v1540 = vadd.f32 %v1396, %v1466
  %v1541 = vxor.u32 %v1540, 2147483648
  %v1542 = vmul.f32 %v1541, 1.442695
  %v1543 = vpow.pop %v1542
  %v1544 = vadd.f32 %v1543, 1.0
  %v1545 = vrcp.pop %v1544
  %v1546 = vmul.f32 1.0, %v1545
  %v1547 = vadd.f32 %v1397, %v1468
  %v1548 = vxor.u32 %v1547, 2147483648
  %v1549 = vmul.f32 %v1548, 1.442695
  %v1550 = vpow.pop %v1549
  %v1551 = vadd.f32 %v1550, 1.0
  %v1552 = vrcp.pop %v1551
  %v1553 = vmul.f32 1.0, %v1552
  %v1554 = vadd.f32 %v1537, %v78
  %v1555 = vmul.f32 %v1546, %v1554
  %v1556 = vadd.f32 %v1398, %v1555
  %v1557 = vtanh.pop %v1556
  %v1558 = vsub.f32 1.0, %v1553
  %v1559 = vmul.f32 %v1558, %v1557
  %v1560 = vmul.f32 %v1553, %v1392
  %v1561 = vadd.f32 %v1559, %v1560
  %s1562 = sadd.s32 %s80, 7
  %v1563 = vstv %s1562
  %vm1564 = vcmp.lt.s32.totalorder %v1563, %v72
  %v1565 = vsel %vm1564, 1, 0
  %v1566 = vcvt.s32.f32 %v1565
  %1568 = vset.pattern.permute.xlu0 0
  %1569 = vperm.xlu0 %1568, %v1566
  %v1570 = vpop.permute.xlu0 %1569
  %v1572 = vmul.f32 %v1570, %v1561
  %v1573 = vsub.f32 1.0, %v1566
  %1575 = vset.pattern.permute.xlu0 0
  %1576 = vperm.xlu0 %1575, %v1573
  %v1577 = vpop.permute.xlu0 %1576
  %v1579 = vmul.f32 %v1577, %v1392
  %v1580 = vadd.f32 %v1572, %v1579
  %s1581 = scalar_lea.vmem %s4, 56
  %1582 = vst [vmem:[%s1581] sm:$0xff] %v1572
  %1583 = vst [vmem:[#allocation2] sm:$0xff] %v1580
  // Predicated region
  $region22: #{encoder_forward.1} parent=0 // pred_check
    %p1584 = pneg %p19
  $region23: #{encoder_forward.1} parent=0 // pred_check_branch
    %1586 = sbr.rel (%p1584) target = $region25
  $region24: #{encoder_forward.1} parent=0 // pred_region
    %1587 = vst [vmem:[%s5] sm:$0xff] %v1580
  $region25: #{encoder_forward.1} parent=0 // pred_fallthru
    _
  // Predicated region
  $region26: #{encoder_forward.1} parent=0 // pred_check
    _
  $region27: #{encoder_forward.1} parent=0 // pred_check_branch
    %1589 = sbr.rel (0) target = $region29
  $region28: #{encoder_forward.1} parent=0 // pred_region
    _
  $region29: #{encoder_forward.1} parent=0 // pred_fallthru
    _
  // Predicated region
  $region30: #{encoder_forward.1} parent=0 // pred_check
    _
  $region31: #{encoder_forward.1} parent=0 // pred_check_branch
    %1591 = sbr.rel (0) target = $region33
  $region32: #{encoder_forward.1} parent=0 // pred_region
    _
  $region33: #{encoder_forward.1} parent=0 // pred_fallthru
    _
  // Predicated region
  $region34: #{encoder_forward.1} parent=0 // pred_check
    _
  $region35: #{encoder_forward.1} parent=0 // pred_check_branch
    %1593 = sbr.rel (0) target = $region37
  $region36: #{encoder_forward.1} parent=0 // pred_region
    _
  $region37: #{encoder_forward.1} parent=0 // pred_fallthru
    _
  // Predicated region
  $region38: #{encoder_forward.1} parent=0 // pred_check
    _
  $region39: #{encoder_forward.1} parent=0 // pred_check_branch
    %1595 = sbr.rel (0) target = $region41
  $region40: #{encoder_forward.1} parent=0 // pred_region
    _
  $region41: #{encoder_forward.1} parent=0 // pred_fallthru
    _

</llo_original>
